<compile_context>
chip_gen: v6e
topology: v6e:2x2x1
jax: 0.10.0
libtpu: 0.0.40
codegen_flags: <defaults>
</compile_context>

<pallas_src>
import functools

import jax
import jax.numpy as jnp
from jax import lax
from jax.experimental import pallas as pl
from jax.experimental.pallas import tpu as pltpu

_DROP_P = 0.5                           # F.dropout default probability
_HIGHEST = jax.lax.Precision.HIGHEST    # exact-ish f32 matmuls (kernel + ref)


def _round_up(a, m):
    return ((a + m - 1) // m) * m


def _i32(v):
    """Python uint32-style constant -> equivalent signed int32 value."""
    v &= 0xFFFFFFFF
    return v - (1 << 32) if v >= (1 << 31) else v


def _lsr(x, k):
    """Logical right shift for int32 arrays (mask off the sign extension)."""
    return (x >> k) & jnp.int32((1 << (32 - k)) - 1)


def _keep_mask(shape, tile_b, seed, salt, keep_prob):
    """Bernoulli(keep_prob) mask from a counter-based int32 hash.

    Mixes the *global* column (batch) index -- including pl.program_id(0) --
    plus the row index and a per-layer salt, so every grid tile and every
    dropout layer gets an independent mask.  Pure int32 ops: portable to both
    Mosaic and interpret mode (no pltpu.prng_* needed).
    """
    row = lax.broadcasted_iota(jnp.int32, shape, 0)
    col = lax.broadcasted_iota(jnp.int32, shape, 1) + pl.program_id(0) * tile_b
    mix = _i32(seed * 0x9E3779B1 + salt * 0x85EBCA77 + 0x1B873593)
    h = (row * jnp.int32(_i32(0xCC9E2D51))) ^ (col * jnp.int32(_i32(0x1B873593)))
    h = h ^ jnp.int32(mix)
    # murmur3-style finalizer
    h = h ^ _lsr(h, 16)
    h = h * jnp.int32(_i32(0x7FEB352D))
    h = h ^ _lsr(h, 15)
    h = h * jnp.int32(_i32(0x846CA68B))
    h = h ^ _lsr(h, 16)
    bits24 = _lsr(h, 8)                                  # uniform in [0, 2^24)
    thresh = int(round(keep_prob * float(1 << 24)))      # proper threshold, any p
    return bits24 < jnp.int32(thresh)


def _dropout(x, *, tile_b, seed, salt, p):
    keep_prob = 1.0 - p
    keep = _keep_mask(x.shape, tile_b, seed, salt, keep_prob)
    return jnp.where(keep, x * jnp.float32(1.0 / keep_prob), jnp.zeros_like(x))


def _fc_kernel(xT_ref, wb_ref, o_ref, *, num_in, h0, h1, tile_b, drop, seed, p):
    # Packed parameter layout (columns of wb):
    #   [0, num_in)                 : W0^T  rows [:h0]
    #   [num_in, num_in+h0)         : W1^T  rows [:h1]
    #   [num_in+h0, num_in+h0+h1)   : W2^T  rows [:1]
    #   num_in+h0+h1 + {0, 1, 2}    : b0, b1, b2 columns
    c1 = num_in
    c2 = num_in + h0
    cb = num_in + h0 + h1
    w0t = wb_ref[0:h0, 0:num_in]          # (h0, num_in)
    w1t = wb_ref[0:h1, c1:c1 + h0]        # (h1, h0)
    w2t = wb_ref[0:1, c2:c2 + h1]         # (1,  h1)
    b0 = wb_ref[0:h0, cb:cb + 1]          # (h0, 1)
    b1 = wb_ref[0:h1, cb + 1:cb + 2]      # (h1, 1)
    b2 = wb_ref[0:1, cb + 2:cb + 3]       # (1,  1)

    xT = xT_ref[...]                      # (num_in, TILE_B): batch on lanes

    # Layer 0: tanh(W0 @ X + b0)
    h = jnp.tanh(jnp.dot(w0t, xT, preferred_element_type=jnp.float32,
                         precision=_HIGHEST) + b0)
    if drop:
        h = _dropout(h, tile_b=tile_b, seed=seed, salt=0, p=p)

    # Layer 1: tanh(W1 @ H + b1)
    h = jnp.tanh(jnp.dot(w1t, h, preferred_element_type=jnp.float32,
                         precision=_HIGHEST) + b1)
    if drop:
        h = _dropout(h, tile_b=tile_b, seed=seed, salt=1, p=p)

    # Last layer: W2 @ H + b2   -> (1, TILE_B), lane-dense store
    y = jnp.dot(w2t, h, preferred_element_type=jnp.float32,
                precision=_HIGHEST) + b2
    o_ref[...] = y.astype(o_ref.dtype)


def fc_network_forward(x, params, *, seed=0, drop=True, p=_DROP_P, tile_b=8192):
    """FCNetwork forward in one gridded Pallas call.

    params = [(W0, b0), (W1, b1), (W2, b2)] with W stored (in, out), b (1, out).
    Returns float32 of shape (batch, 1).
    """
    (w0, b0), (w1, b1), (w2, b2) = params
    batch, num_in = x.shape
    h0 = w0.shape[1]
    h1 = w1.shape[1]

    # Batch lives on the lane axis: tile must be a multiple of 128; pad the
    # batch so the grid divides evenly (padded rows are sliced off afterwards).
    tile_b = max(128, min(_round_up(tile_b, 128), _round_up(batch, 128)))
    padded = _round_up(batch, tile_b)
    grid = (padded // tile_b,)

    # Layout plumbing in the wrapper (endorsed): x transposed to (num_in, batch).
    xT = jnp.zeros((num_in, padded), jnp.float32).at[:, :batch].set(x.T)

    # Pack every weight/bias into one small resident VMEM operand.
    rows = max(h0, h1, 1)
    cols = num_in + h0 + h1 + 3
    wb = jnp.zeros((rows, cols), jnp.float32)
    wb = wb.at[:h0, :num_in].set(w0.T)
    wb = wb.at[:h1, num_in:num_in + h0].set(w1.T)
    wb = wb.at[:1, num_in + h0:num_in + h0 + h1].set(w2.T)
    wb = wb.at[:h0, cols - 3:cols - 2].set(b0.reshape(h0, 1))
    wb = wb.at[:h1, cols - 2:cols - 1].set(b1.reshape(h1, 1))
    wb = wb.at[:1, cols - 1:cols].set(b2.reshape(1, 1))

    kernel = functools.partial(
        _fc_kernel, num_in=num_in, h0=h0, h1=h1, tile_b=tile_b,
        drop=bool(drop), seed=int(seed), p=float(p))

    yT = pl.pallas_call(
        kernel,
        out_shape=jax.ShapeDtypeStruct((1, padded), jnp.float32),
        grid=grid,
        in_specs=[
            # Streamed, double-buffered x tile: batch on lanes.
            pl.BlockSpec((num_in, tile_b), lambda i: (0, i)),
            # Packed weights/biases: constant index_map -> resident, one DMA.
            pl.BlockSpec((rows, cols), lambda i: (0, 0)),
        ],
        out_specs=pl.BlockSpec((1, tile_b), lambda i: (0, i)),
        compiler_params=pltpu.CompilerParams(
            dimension_semantics=("parallel",)),   # v7x: 2 TCs split the grid
    )(xT, wb)

    return yT[0, :batch].reshape(batch, 1)


def init_fc_params(key, num_in, layers=(5, 5)):
    """Deterministic init mirroring nn.Linear defaults: U(-1/sqrt(fan_in), +)."""
    dims = [num_in, layers[0], layers[1], 1]
    params = []
    for i in range(3):
        fan_in, fan_out = dims[i], dims[i + 1]
        key, kw, kb = jax.random.split(key, 3)
        bound = 1.0 / jnp.sqrt(jnp.float32(fan_in))
        w = jax.random.uniform(kw, (fan_in, fan_out), jnp.float32, -bound, bound)
        b = jax.random.uniform(kb, (1, fan_out), jnp.float32, -bound, bound)
        params.append((w, b))
    return params


def fc_network_ref(x, params):
    """Pure-JAX reference (dropout disabled) for the correctness check."""
    (w0, b0), (w1, b1), (w2, b2) = params
    h = jnp.tanh(jnp.dot(x, w0, precision=_HIGHEST) + b0)
    h = jnp.tanh(jnp.dot(h, w1, precision=_HIGHEST) + b1)
    return jnp.dot(h, w2, precision=_HIGHEST) + b2


if __name__ == "__main__":
    key = jax.random.PRNGKey(0)
    num_in, batch = 32, 200          # batch deliberately NOT a multiple of 128
    k_params, k_x = jax.random.split(key)

    params = init_fc_params(k_params, num_in, layers=(5, 5))
    x = jax.random.normal(k_x, (batch, num_in), dtype=jnp.float32)

    # Eval-mode (dropout off): compare against the pure-JAX reference.
    # tile_b=128 forces a multi-step grid so the tiling/pipelining path runs.
    y_eval = fc_network_forward(x, params, drop=False, tile_b=128)
    y_ref = fc_network_ref(x, params)
    jax.block_until_ready(y_eval)
    assert y_eval.shape == (batch, 1)
    assert jnp.allclose(y_eval, y_ref, atol=1e-3, rtol=1e-3), float(
        jnp.max(jnp.abs(y_eval - y_ref)))

    # Training-mode forward (in-kernel dropout, p=0.5, inverted scaling).
    y_train = fc_network_forward(x, params, seed=1234, drop=True, tile_b=128)
    jax.block_until_ready(y_train)
    assert y_train.shape == (batch, 1)
    assert bool(jnp.all(jnp.isfinite(y_train)))

    print("KERNEL_OK")
</pallas_src>

<mosaic_0001>
module attributes {stable_mosaic.version = 11 : i64} {
  func.func @_fc_kernel(%arg0: i32, %arg1: memref<32x128xf32, #tpu.memory_space<vmem>>, %arg2: memref<5x45xf32, #tpu.memory_space<vmem>>, %arg3: memref<1x128xf32, #tpu.memory_space<vmem>>) attributes {dimension_semantics = [#tpu.dimension_semantics<parallel>], iteration_bounds = array<i64: 2>, scalar_prefetch = 0 : i64, scratch_operands = 0 : i64, tpu.core_type = #tpu.core_type<tc>, window_params = [{transform_indices = @transform_0, window_bounds = array<i64: 32, 128>}, {pipeline_mode = #tpu.pipeline_mode<synchronous>, transform_indices = @transform_1, window_bounds = array<i64: 5, 45>}, {transform_indices = @transform_2, window_bounds = array<i64: 1, 128>}]} {
    %c0 = arith.constant 0 : index
    %c0_0 = arith.constant 0 : index
    %0 = vector.load %arg2[%c0, %c0_0] : memref<5x45xf32, #tpu.memory_space<vmem>>, vector<5x32xf32>
    %c0_1 = arith.constant 0 : index
    %c32 = arith.constant 32 : index
    %1 = vector.load %arg2[%c0_1, %c32] : memref<5x45xf32, #tpu.memory_space<vmem>>, vector<5x5xf32>
    %c0_2 = arith.constant 0 : index
    %c37 = arith.constant 37 : index
    %2 = vector.load %arg2[%c0_2, %c37] : memref<5x45xf32, #tpu.memory_space<vmem>>, vector<1x5xf32>
    %c0_3 = arith.constant 0 : index
    %c42 = arith.constant 42 : index
    %3 = vector.load %arg2[%c0_3, %c42] : memref<5x45xf32, #tpu.memory_space<vmem>>, vector<5x1xf32>
    %c0_4 = arith.constant 0 : index
    %c43 = arith.constant 43 : index
    %4 = vector.load %arg2[%c0_4, %c43] : memref<5x45xf32, #tpu.memory_space<vmem>>, vector<5x1xf32>
    %c0_5 = arith.constant 0 : index
    %c44 = arith.constant 44 : index
    %5 = vector.load %arg2[%c0_5, %c44] : memref<5x45xf32, #tpu.memory_space<vmem>>, vector<1x1xf32>
    %c0_6 = arith.constant 0 : index
    %c0_7 = arith.constant 0 : index
    %6 = vector.load %arg1[%c0_6, %c0_7] : memref<32x128xf32, #tpu.memory_space<vmem>>, vector<32x128xf32>
    %cst = arith.constant dense<0.000000e+00> : vector<5x128xf32>
    %7 = tpu.matmul %0, %6, %cst {dimension_numbers = #tpu.dot_dimension_numbers<[1], [0], [0], [1], [0, 0, 1, 1], [], []>, precision = #tpu.contract_precision<fp32>} : vector<5x32xf32>, vector<32x128xf32>, vector<5x128xf32> -> vector<5x128xf32>
    %8 = vector.broadcast %3 : vector<5x1xf32> to vector<5x128xf32>
    %9 = arith.addf %7, %8 : vector<5x128xf32>
    %10 = math.tanh %9 : vector<5x128xf32>
    %cst_8 = arith.constant dense<0.000000e+00> : vector<5x128xf32>
    %11 = tpu.matmul %1, %10, %cst_8 {dimension_numbers = #tpu.dot_dimension_numbers<[1], [0], [0], [1], [0, 0, 1, 1], [], []>, precision = #tpu.contract_precision<fp32>} : vector<5x5xf32>, vector<5x128xf32>, vector<5x128xf32> -> vector<5x128xf32>
    %12 = vector.broadcast %4 : vector<5x1xf32> to vector<5x128xf32>
    %13 = arith.addf %11, %12 : vector<5x128xf32>
    %14 = math.tanh %13 : vector<5x128xf32>
    %cst_9 = arith.constant dense<0.000000e+00> : vector<1x128xf32>
    %15 = tpu.matmul %2, %14, %cst_9 {dimension_numbers = #tpu.dot_dimension_numbers<[1], [0], [0], [1], [0, 0, 1, 1], [], []>, precision = #tpu.contract_precision<fp32>} : vector<1x5xf32>, vector<5x128xf32>, vector<1x128xf32> -> vector<1x128xf32>
    %16 = vector.broadcast %5 : vector<1x1xf32> to vector<1x128xf32>
    %17 = arith.addf %15, %16 : vector<1x128xf32>
    %c0_10 = arith.constant 0 : index
    %c0_11 = arith.constant 0 : index
    %18 = vector.load %arg3[%c0_10, %c0_11] : memref<1x128xf32, #tpu.memory_space<vmem>>, vector<1x128xf32>
    tpu.vector_store %arg3[%c0_10, %c0_11], %17 {strides = array<i32>} : memref<1x128xf32, #tpu.memory_space<vmem>>, vector<1x128xf32>,
    return
  }
  func.func @transform_0(%arg0: i32) -> (i32, i32) {
    %c0_i32 = arith.constant 0 : i32
    %c0_i32_0 = arith.constant 0 : i32
    return %c0_i32, %arg0 : i32, i32
  }
  func.func @transform_1(%arg0: i32) -> (i32, i32) {
    %c0_i32 = arith.constant 0 : i32
    %c0_i32_0 = arith.constant 0 : i32
    %c0_i32_1 = arith.constant 0 : i32
    return %c0_i32, %c0_i32_0 : i32, i32
  }
  func.func @transform_2(%arg0: i32) -> (i32, i32) {
    %c0_i32 = arith.constant 0 : i32
    %c0_i32_0 = arith.constant 0 : i32
    return %c0_i32, %arg0 : i32, i32
  }
}

</mosaic_0001>

<llo_original>
// kernel: tpu_custom_call.1
$region0: #{tpu_custom_call.1}
  #allocation0 [shape = 'u32[]', space=smem, size = 0x4, offset = 0x4, fixed_abs, tag = 'smem constant byte address 0x4 - core index']
  #allocation1 [shape = 'u32[144,128]{1,0:T(1,128)}', space=vmem, size = 0x12000, scoped, tag = 'internal scratch']
  %s0 = inlined_call_operand.hbm [shape: f32[32,256], index: 0, kind: input, shape index: {}]
  %s1 = inlined_call_operand.hbm [shape: f32[5,45], index: 1, kind: input, shape index: {}]
  %s2 = inlined_call_operand.hbm [shape: f32[1,256], index: 2, kind: output, shape index: {}]
  %s3 = sld [smem:[#allocation0]]
  $region49: #{tpu_custom_call.1} parent=0
    _
  %s5 = ssub.s32 1, %s3
  %s6 = scalar_select 0, %s5, %s3
  $region1: #{tpu_custom_call.1} parent=0
    #allocation2 [shape = 'u8[32768]{0}', space=vmem, size = 0x8000, scoped, tag = 'input window, operand 0']
    #allocation3 [shape = 's32[2]{0}', space=sflag, size = 0x8, scoped, tag = 'scoped memory for tpu_custom_call.1']
    #allocation4 [shape = 's32[2]{0}', space=sflag, size = 0x8, scoped, tag = 'scoped memory for tpu_custom_call.1']
    #allocation5 [shape = 'u8[4096]{0}', space=vmem, size = 0x1000, scoped, tag = 'input window, operand 1, single buffered']
    #allocation6 [shape = 's32[1]{0}', space=sflag, size = 0x4, scoped, tag = 'scoped memory for tpu_custom_call.1']
    #allocation7 [shape = 'u8[1024]{0}', space=vmem, size = 0x400, scoped, tag = 'output window, operand 0']
    %7 = vsyncpa [#allocation3], 0
    %s8 = scalar_lea.sflag [#allocation3], 1
    %9 = vsyncpa %s8, 0
    %10 = vsyncpa [#allocation6], 0
    %11 = vsyncpa [#allocation4], 0
    %s12 = scalar_lea.sflag [#allocation4], 1
    %13 = vsyncpa %s12, 0
    loop: start=0, step=1, limit=4
    $region2: #{tpu_custom_call.1} parent=1 // loop_pre_header
      _
    $region3: #{tpu_custom_call.1} parent=1 // loop_header
      %s15 = sphi 0, %s19
      %p16 = scmp.ge.s32.totalorder %s15, 4
      %s25 = sphi 0, %s27
      %s28 = sphi 0, %s25
      %s29 = sphi 0, %s28
      %s45 = sphi 0, %s29
      %s49 = sphi 0, %s49
      %s51 = sphi 0, %s49
      %s52 = sphi 0, %s51
      %s66 = sphi 0, %s52
      %s72 = sphi 0, %s74
      %s75 = sphi 0, %s72
      %s76 = sphi 0, %s75
      %s92 = sphi 0, %s76
    $region4: #{tpu_custom_call.1} parent=1 // loop_header_branch
      %18 = sbr.rel (%p16) target = $region8
    $region5: #{tpu_custom_call.1} parent=1 // loop_body
      %s20 = ssub.s32 %s15, 1
      %s21 = ssub.s32 %s15, 2
      %s22 = sadd.s32 %s15, 1
      %s23 = ssub.s32 %s15, %s22
      %p24 = scmp.eq.s32.totalorder %s23, 0
      %s26 = sadd.s32 %s25, 1
      %s27 = scalar_select %p24, %s25, %s26
      %p30 = pneg %p24
      %p31 = scmp.eq.s32.totalorder %s15, 1
      %p32 = por %p30, %p31
      %p33 = scmp.ne.s32.totalorder %s25, %s28
      %p34 = scmp.eq.s32.totalorder %s15, 0
      %p35 = por %p33, %p34
      %p36 = scmp.ne.s32.totalorder %s25, %s28
      %p37 = scmp.eq.s32.totalorder %s20, 1
      %p38 = por %p36, %p37
      %p39 = scmp.ne.s32.totalorder %s28, %s29
      %p40 = scmp.eq.s32.totalorder %s20, 0
      %p41 = por %p39, %p40
      %p42 = scmp.ne.s32.totalorder %s28, %s29
      %p43 = scmp.eq.s32.totalorder %s21, 1
      %p44 = por %p42, %p43
      %p46 = scmp.ne.s32.totalorder %s29, %s45
      %p47 = scmp.eq.s32.totalorder %s21, 0
      %p48 = por %p46, %p47
      %s50 = sadd.s32 %s49, 1
      %p53 = scmp.eq.s32.totalorder %s15, 1
      %p54 = scmp.ne.s32.totalorder %s49, %s51
      %p55 = scmp.eq.s32.totalorder %s15, 0
      %p56 = por %p54, %p55
      %p57 = scmp.ne.s32.totalorder %s49, %s51
      %p58 = scmp.eq.s32.totalorder %s20, 1
      %p59 = por %p57, %p58
      %p60 = scmp.ne.s32.totalorder %s51, %s52
      %p61 = scmp.eq.s32.totalorder %s20, 0
      %p62 = por %p60, %p61
      %p63 = scmp.ne.s32.totalorder %s51, %s52
      %p64 = scmp.eq.s32.totalorder %s21, 1
      %p65 = por %p63, %p64
      %p67 = scmp.ne.s32.totalorder %s52, %s66
      %p68 = scmp.eq.s32.totalorder %s21, 0
      %p69 = por %p67, %p68
      %s70 = ssub.s32 %s15, %s22
      %p71 = scmp.eq.s32.totalorder %s70, 0
      %s73 = sadd.s32 %s72, 1
      %s74 = scalar_select %p71, %s72, %s73
      %p77 = pneg %p71
      %p78 = scmp.eq.s32.totalorder %s15, 1
      %p79 = por %p77, %p78
      %p80 = scmp.ne.s32.totalorder %s72, %s75
      %p81 = scmp.eq.s32.totalorder %s15, 0
      %p82 = por %p80, %p81
      %p83 = scmp.ne.s32.totalorder %s72, %s75
      %p84 = scmp.eq.s32.totalorder %s20, 1
      %p85 = por %p83, %p84
      %p86 = scmp.ne.s32.totalorder %s75, %s76
      %p87 = scmp.eq.s32.totalorder %s20, 0
      %p88 = por %p86, %p87
      %p89 = scmp.ne.s32.totalorder %s75, %s76
      %p90 = scmp.eq.s32.totalorder %s21, 1
      %p91 = por %p89, %p90
      %p93 = scmp.ne.s32.totalorder %s76, %s92
      %p94 = scmp.eq.s32.totalorder %s21, 0
      %p95 = por %p93, %p94
      %p96 = scmp.le.s32.totalorder 1, %s15
      %p97 = scmp.lt.s32.totalorder %s15, 3
      %p98 = pnand %p96, %p97
      %p99 = pneg %p98
      // Predicated region
      $region9: #{tpu_custom_call.1} parent=5 // pred_check
        _
      $region10: #{tpu_custom_call.1} parent=5 // pred_check_branch
        %101 = sbr.rel (%p98) target = $region12
      $region11: #{tpu_custom_call.1} parent=5 // pred_region
        %s102 = ssub.s32 %s15, 1
        // Predicated region
        $region13: #{tpu_custom_call.1} parent=11 // pred_check
          %p103 = pneg %p62
        $region14: #{tpu_custom_call.1} parent=11 // pred_check_branch
          %105 = sbr.rel (%p103) target = $region16
        $region15: #{tpu_custom_call.1} parent=11 // pred_region
          %s107 = ssub.s32 128, 128
          %108 = vsyncadd [#allocation6], %s107
          %s110 = sshll.u32 [#allocation5], 4
          %s111 = int_to_ptr.vmem [resolvable:$true] %s110
          %113 = dma.hbm_to_vmem [thread:$0]  %s1, 128, %s111, [#allocation6]
        $region16: #{tpu_custom_call.1} parent=11 // pred_fallthru
          _
      $region12: #{tpu_custom_call.1} parent=5 // pred_fallthru
        _
      %p114 = scmp.lt.s32.totalorder %s15, 2
      // Predicated region
      $region17: #{tpu_custom_call.1} parent=5 // pred_check
        %p115 = pneg %p114
      $region18: #{tpu_custom_call.1} parent=5 // pred_check_branch
        %117 = sbr.rel (%p115) target = $region20
      $region19: #{tpu_custom_call.1} parent=5 // pred_region
        // Predicated region
        $region21: #{tpu_custom_call.1} parent=19 // pred_check
          %p118 = pneg %p35
        $region22: #{tpu_custom_call.1} parent=19 // pred_check_branch
          %120 = sbr.rel (%p118) target = $region24
        $region23: #{tpu_custom_call.1} parent=19 // pred_region
          %s121 = sand.u32 %s25, 1
          %s122 = scalar_lea.sflag [#allocation3], %s121
          %s123 = sand.u32 %s25, 1
          %s124 = smul.addr %s123, 32
          %s125 = scalar_lea.vmem [#allocation2], %s124
          %s127 = ssub.s32 512, 512
          %128 = vsyncadd %s122, %s127
          %s129 = smul.addr %s15, 128
          %s130 = scalar_lea.hbm %s0, %s129
          %s131 = sshll.u32 %s125, 4
          %s132 = int_to_ptr.vmem [resolvable:$true] %s131
          %137 = dma.hbm_to_vmem [thread:$0]  %s130, 512, %s132, %s122, 256, 128, 8
        $region24: #{tpu_custom_call.1} parent=19 // pred_fallthru
          _
      $region20: #{tpu_custom_call.1} parent=5 // pred_fallthru
        _
      %p138 = scmp.le.s32.totalorder 1, %s15
      %p139 = scmp.lt.s32.totalorder %s15, 3
      %p140 = pnand %p138, %p139
      %p141 = pneg %p140
      // Predicated region
      $region25: #{tpu_custom_call.1} parent=5 // pred_check
        _
      $region26: #{tpu_custom_call.1} parent=5 // pred_check_branch
        %143 = sbr.rel (%p140) target = $region28
      $region27: #{tpu_custom_call.1} parent=5 // pred_region
        %s144 = ssub.s32 %s15, 1
        %s145 = sand.u32 %s28, 1
        %s146 = scalar_lea.sflag [#allocation3], %s145
        %s147 = sand.u32 %s28, 1
        %s148 = smul.addr %s147, 32
        %s149 = scalar_lea.vmem [#allocation2], %s148
        // Predicated region
        $region29: #{tpu_custom_call.1} parent=27 // pred_check
          %p150 = pneg %p41
        $region30: #{tpu_custom_call.1} parent=27 // pred_check_branch
          %152 = sbr.rel (%p150) target = $region32
        $region31: #{tpu_custom_call.1} parent=27 // pred_region
          %153 = dma.done %s146, 512
        $region32: #{tpu_custom_call.1} parent=27 // pred_fallthru
          _
        // Predicated region
        $region33: #{tpu_custom_call.1} parent=27 // pred_check
          %p154 = pneg %p62
        $region34: #{tpu_custom_call.1} parent=27 // pred_check_branch
          %156 = sbr.rel (%p154) target = $region36
        $region35: #{tpu_custom_call.1} parent=27 // pred_region
          %157 = dma.done [#allocation6], 128
        $region36: #{tpu_custom_call.1} parent=27 // pred_fallthru
          _
        %s158 = sand.u32 %s28, 1
        %s159 = scalar_lea.sflag [#allocation3], %s158
        %s160 = sand.u32 %s28, 1
        %s161 = smul.addr %s160, 32
        %s162 = scalar_lea.vmem [#allocation2], %s161
        %p163 = pneg %p41
        %p164 = pneg %p38
        %p165 = pneg %p62
        %p166 = pneg %p59
        %p167 = pneg %p88
        %p168 = pneg %p85
        %s169 = sand.u32 %s75, 1
        %s170 = scalar_lea.sflag [#allocation4], %s169
        %s171 = sand.u32 %s75, 1
        %s172 = scalar_lea.vmem [#allocation7], %s171
        %v173 = vld [vmem:[#allocation5] sm:$0x1f]
        %v174 = vld [vmem:[#allocation5] sm:$0x1]
        %v175 = vld [vmem:[%s149] sm:$0xff]
        %v176 = vld [vmem:[%s149 + $0x8] sm:$0xff]
        %v177 = vld [vmem:[%s149 + $0x10] sm:$0xff]
        %v178 = vld [vmem:[%s149 + $0x18] sm:$0xff]
        %180 = vset.pattern.permute.xlu0 42
        %181 = vperm.xlu0 %180, %v173
        %v182 = vpop.permute.xlu0 %181
        %vm184 = vcmask 261120
        %v185 = vsel %vm184, %v173, 0
        %187 = vmatprep.subr.mxu0 0.0
        %188 = vmatpush1.msra.mxu0 0.0
        %189 = vmatprep.subr.mxu0 0.0
        %190 = vmatpush1.msra.mxu0 0.0
        %191 = vmatprep.subr.mxu0 0.0
        %192 = vmatpush1.msra.mxu0 0.0
        %193 = vmatprep.subr.mxu0 0.0
        %194 = vmatpush1.msra.mxu0 0.0
        %195 = vmatprep.subr.mxu0 0.0
        %196 = vmatpush1.msra.mxu0 0.0
        %197 = vmatprep.subr.mxu0 0.0
        %198 = vmatpush1.msra.mxu0 0.0
        %199 = vmatprep.subr.mxu0 0.0
        %200 = vmatpush1.msra.mxu0 0.0
        %201 = vmatprep.subr.mxu0 0.0
        %202 = vmatpush1.msra.mxu0 0.0
        %203 = vmatprep.subr.mxu0 0.0
        %204 = vmatpush1.msra.mxu0 0.0
        %205 = vmatprep.subr.mxu0 0.0
        %206 = vmatpush1.msra.mxu0 0.0
        %207 = vmatprep.subr.mxu0 0.0
        %208 = vmatpush1.msra.mxu0 0.0
        %209 = vmatprep.subr.mxu0 0.0
        %210 = vmatpush1.msra.mxu0 0.0
        %211 = vmatprep.subr.mxu0 0.0
        %v212 = vand.u32 %v178, 4294901760
        %213 = vmatpush1.msra.mxu0 %v212
        %214 = vmatprep.subr.mxu0 0.0
        %v215 = vand.u32 %v177, 4294901760
        %216 = vmatpush1.msra.mxu0 %v215
        %217 = vmatprep.subr.mxu0 0.0
        %v218 = vand.u32 %v176, 4294901760
        %219 = vmatpush1.msra.mxu0 %v218
        %220 = vmatprep.subr.mxu0 0.0
        %v221 = vand.u32 %v175, 4294901760
        %222 = vmatpush1.msra.mxu0 %v221
        %223 = vmatprep.subr.mxu0 0.0
        %224 = vmatpush2.msra.mxu0 0.0
        %225 = vmatprep.subr.mxu0 0.0
        %226 = vmatpush2.msra.mxu0 0.0
        %227 = vmatprep.subr.mxu0 0.0
        %228 = vmatpush2.msra.mxu0 0.0
        %229 = vmatprep.subr.mxu0 0.0
        %230 = vmatpush2.msra.mxu0 0.0
        %231 = vmatprep.subr.mxu0 0.0
        %232 = vmatpush2.msra.mxu0 0.0
        %233 = vmatprep.subr.mxu0 0.0
        %234 = vmatpush2.msra.mxu0 0.0
        %235 = vmatprep.subr.mxu0 0.0
        %236 = vmatpush2.msra.mxu0 0.0
        %237 = vmatprep.subr.mxu0 0.0
        %238 = vmatpush2.msra.mxu0 0.0
        %239 = vmatprep.subr.mxu0 0.0
        %240 = vmatpush2.msra.mxu0 0.0
        %241 = vmatprep.subr.mxu0 0.0
        %242 = vmatpush2.msra.mxu0 0.0
        %243 = vmatprep.subr.mxu0 0.0
        %244 = vmatpush2.msra.mxu0 0.0
        %245 = vmatprep.subr.mxu0 0.0
        %246 = vmatpush2.msra.mxu0 0.0
        %247 = vmatprep.subr.mxu0 0.0
        %248 = vmatpush2.msra.mxu0 0.0
        %249 = vmatprep.subr.mxu0 0.0
        %250 = vmatpush2.msra.mxu0 0.0
        %251 = vmatprep.subr.mxu0 0.0
        %252 = vmatpush2.msra.mxu0 0.0
        %253 = vmatprep.subr.mxu0 0.0
        %254 = vmatpush2.msra.mxu0 0.0
        %255 = vmatprep.mubr.f32.mxu0 0.0
        %v256 = vand.u32 %v185, 4294901760
        %v257 = vsub.f32 %v185, %v256
        %v258 = vand.u32 %v257, 4294901760
        %v259 = vsub.f32 %v257, %v258
        %v260 = vand.u32 %v259, 4294901760
        %261 = vmatmul.mubr.f32.gmra.mxu0 %v260
        %v262 = vpop.f32.mrf.mxu0
        %v263 = vadd.f32 %v182, %v262
        %v264 = vpop.f32.mrf.mxu0
        %265 = vdwg.mxu0
        %266 = vmatprep.subr.mxu0 0.0
        %267 = vmatpush1.msra.mxu0 0.0
        %268 = vmatprep.subr.mxu0 0.0
        %269 = vmatpush1.msra.mxu0 0.0
        %270 = vmatprep.subr.mxu0 0.0
        %271 = vmatpush1.msra.mxu0 0.0
        %272 = vmatprep.subr.mxu0 0.0
        %273 = vmatpush1.msra.mxu0 0.0
        %274 = vmatprep.subr.mxu0 0.0
        %275 = vmatpush1.msra.mxu0 0.0
        %276 = vmatprep.subr.mxu0 0.0
        %277 = vmatpush1.msra.mxu0 0.0
        %278 = vmatprep.subr.mxu0 0.0
        %279 = vmatpush1.msra.mxu0 0.0
        %280 = vmatprep.subr.mxu0 0.0
        %281 = vmatpush1.msra.mxu0 0.0
        %282 = vmatprep.subr.mxu0 0.0
        %283 = vmatpush1.msra.mxu0 0.0
        %284 = vmatprep.subr.mxu0 0.0
        %285 = vmatpush1.msra.mxu0 0.0
        %286 = vmatprep.subr.mxu0 0.0
        %287 = vmatpush1.msra.mxu0 0.0
        %288 = vmatprep.subr.mxu0 0.0
        %289 = vmatpush1.msra.mxu0 0.0
        %290 = vmatprep.subr.mxu0 0.0
        %v291 = vand.u32 %v178, 4294901760
        %v292 = vsub.f32 %v178, %v291
        %v293 = vand.u32 %v292, 4294901760
        %v294 = vsub.f32 %v292, %v293
        %v295 = vand.u32 %v294, 4294901760
        %296 = vmatpush1.msra.mxu0 %v295
        %297 = vmatprep.subr.mxu0 0.0
        %v298 = vand.u32 %v177, 4294901760
        %v299 = vsub.f32 %v177, %v298
        %v300 = vand.u32 %v299, 4294901760
        %v301 = vsub.f32 %v299, %v300
        %v302 = vand.u32 %v301, 4294901760
        %303 = vmatpush1.msra.mxu0 %v302
        %304 = vmatprep.subr.mxu0 0.0
        %v305 = vand.u32 %v176, 4294901760
        %v306 = vsub.f32 %v176, %v305
        %v307 = vand.u32 %v306, 4294901760
        %v308 = vsub.f32 %v306, %v307
        %v309 = vand.u32 %v308, 4294901760
        %310 = vmatpush1.msra.mxu0 %v309
        %311 = vmatprep.subr.mxu0 0.0
        %v312 = vand.u32 %v175, 4294901760
        %v313 = vsub.f32 %v175, %v312
        %v314 = vand.u32 %v313, 4294901760
        %v315 = vsub.f32 %v313, %v314
        %v316 = vand.u32 %v315, 4294901760
        %317 = vmatpush1.msra.mxu0 %v316
        %318 = vmatprep.subr.mxu0 0.0
        %319 = vmatpush2.msra.mxu0 0.0
        %320 = vmatprep.subr.mxu0 0.0
        %321 = vmatpush2.msra.mxu0 0.0
        %322 = vmatprep.subr.mxu0 0.0
        %323 = vmatpush2.msra.mxu0 0.0
        %324 = vmatprep.subr.mxu0 0.0
        %325 = vmatpush2.msra.mxu0 0.0
        %326 = vmatprep.subr.mxu0 0.0
        %327 = vmatpush2.msra.mxu0 0.0
        %328 = vmatprep.subr.mxu0 0.0
        %329 = vmatpush2.msra.mxu0 0.0
        %330 = vmatprep.subr.mxu0 0.0
        %331 = vmatpush2.msra.mxu0 0.0
        %332 = vmatprep.subr.mxu0 0.0
        %333 = vmatpush2.msra.mxu0 0.0
        %334 = vmatprep.subr.mxu0 0.0
        %335 = vmatpush2.msra.mxu0 0.0
        %336 = vmatprep.subr.mxu0 0.0
        %337 = vmatpush2.msra.mxu0 0.0
        %338 = vmatprep.subr.mxu0 0.0
        %339 = vmatpush2.msra.mxu0 0.0
        %340 = vmatprep.subr.mxu0 0.0
        %341 = vmatpush2.msra.mxu0 0.0
        %342 = vmatprep.subr.mxu0 0.0
        %343 = vmatpush2.msra.mxu0 0.0
        %344 = vmatprep.subr.mxu0 0.0
        %345 = vmatpush2.msra.mxu0 0.0
        %346 = vmatprep.subr.mxu0 0.0
        %347 = vmatpush2.msra.mxu0 0.0
        %348 = vmatprep.subr.mxu0 0.0
        %349 = vmatpush2.msra.mxu0 0.0
        %350 = vmatprep.mubr.f32.mxu0 0.0
        %v351 = vand.u32 %v185, 4294901760
        %352 = vmatmul.mubr.f32.gmra.mxu0 %v351
        %v353 = vpop.f32.mrf.mxu0
        %v354 = vadd.f32 %v263, %v353
        %v355 = vpop.f32.mrf.mxu0
        %356 = vdwg.mxu0
        %357 = vmatprep.subr.mxu0 0.0
        %358 = vmatpush1.msra.mxu0 0.0
        %359 = vmatprep.subr.mxu0 0.0
        %360 = vmatpush1.msra.mxu0 0.0
        %361 = vmatprep.subr.mxu0 0.0
        %362 = vmatpush1.msra.mxu0 0.0
        %363 = vmatprep.subr.mxu0 0.0
        %364 = vmatpush1.msra.mxu0 0.0
        %365 = vmatprep.subr.mxu0 0.0
        %366 = vmatpush1.msra.mxu0 0.0
        %367 = vmatprep.subr.mxu0 0.0
        %368 = vmatpush1.msra.mxu0 0.0
        %369 = vmatprep.subr.mxu0 0.0
        %370 = vmatpush1.msra.mxu0 0.0
        %371 = vmatprep.subr.mxu0 0.0
        %372 = vmatpush1.msra.mxu0 0.0
        %373 = vmatprep.subr.mxu0 0.0
        %374 = vmatpush1.msra.mxu0 0.0
        %375 = vmatprep.subr.mxu0 0.0
        %376 = vmatpush1.msra.mxu0 0.0
        %377 = vmatprep.subr.mxu0 0.0
        %378 = vmatpush1.msra.mxu0 0.0
        %379 = vmatprep.subr.mxu0 0.0
        %380 = vmatpush1.msra.mxu0 0.0
        %381 = vmatprep.subr.mxu0 0.0
        %v382 = vand.u32 %v178, 4294901760
        %v383 = vsub.f32 %v178, %v382
        %384 = vmatpush1.msra.mxu0 %v383
        %385 = vmatprep.subr.mxu0 0.0
        %v386 = vand.u32 %v177, 4294901760
        %v387 = vsub.f32 %v177, %v386
        %388 = vmatpush1.msra.mxu0 %v387
        %389 = vmatprep.subr.mxu0 0.0
        %v390 = vand.u32 %v176, 4294901760
        %v391 = vsub.f32 %v176, %v390
        %392 = vmatpush1.msra.mxu0 %v391
        %393 = vmatprep.subr.mxu0 0.0
        %v394 = vand.u32 %v175, 4294901760
        %v395 = vsub.f32 %v175, %v394
        %396 = vmatpush1.msra.mxu0 %v395
        %397 = vmatprep.subr.mxu0 0.0
        %398 = vmatpush2.msra.mxu0 0.0
        %399 = vmatprep.subr.mxu0 0.0
        %400 = vmatpush2.msra.mxu0 0.0
        %401 = vmatprep.subr.mxu0 0.0
        %402 = vmatpush2.msra.mxu0 0.0
        %403 = vmatprep.subr.mxu0 0.0
        %404 = vmatpush2.msra.mxu0 0.0
        %405 = vmatprep.subr.mxu0 0.0
        %406 = vmatpush2.msra.mxu0 0.0
        %407 = vmatprep.subr.mxu0 0.0
        %408 = vmatpush2.msra.mxu0 0.0
        %409 = vmatprep.subr.mxu0 0.0
        %410 = vmatpush2.msra.mxu0 0.0
        %411 = vmatprep.subr.mxu0 0.0
        %412 = vmatpush2.msra.mxu0 0.0
        %413 = vmatprep.subr.mxu0 0.0
        %414 = vmatpush2.msra.mxu0 0.0
        %415 = vmatprep.subr.mxu0 0.0
        %416 = vmatpush2.msra.mxu0 0.0
        %417 = vmatprep.subr.mxu0 0.0
        %418 = vmatpush2.msra.mxu0 0.0
        %419 = vmatprep.subr.mxu0 0.0
        %420 = vmatpush2.msra.mxu0 0.0
        %421 = vmatprep.subr.mxu0 0.0
        %422 = vmatpush2.msra.mxu0 0.0
        %423 = vmatprep.subr.mxu0 0.0
        %424 = vmatpush2.msra.mxu0 0.0
        %425 = vmatprep.subr.mxu0 0.0
        %426 = vmatpush2.msra.mxu0 0.0
        %427 = vmatprep.subr.mxu0 0.0
        %428 = vmatpush2.msra.mxu0 0.0
        %429 = vmatprep.mubr.f32.mxu0 0.0
        %v430 = vand.u32 %v185, 4294901760
        %v431 = vsub.f32 %v185, %v430
        %432 = vmatmul.mubr.f32.gmra.mxu0 %v431
        %v433 = vpop.f32.mrf.mxu0
        %v434 = vadd.f32 %v354, %v433
        %v435 = vpop.f32.mrf.mxu0
        %436 = vdwg.mxu0
        %437 = vmatprep.subr.mxu0 0.0
        %438 = vmatpush1.msra.mxu0 0.0
        %439 = vmatprep.subr.mxu0 0.0
        %440 = vmatpush1.msra.mxu0 0.0
        %441 = vmatprep.subr.mxu0 0.0
        %442 = vmatpush1.msra.mxu0 0.0
        %443 = vmatprep.subr.mxu0 0.0
        %444 = vmatpush1.msra.mxu0 0.0
        %445 = vmatprep.subr.mxu0 0.0
        %446 = vmatpush1.msra.mxu0 0.0
        %447 = vmatprep.subr.mxu0 0.0
        %448 = vmatpush1.msra.mxu0 0.0
        %449 = vmatprep.subr.mxu0 0.0
        %450 = vmatpush1.msra.mxu0 0.0
        %451 = vmatprep.subr.mxu0 0.0
        %452 = vmatpush1.msra.mxu0 0.0
        %453 = vmatprep.subr.mxu0 0.0
        %454 = vmatpush1.msra.mxu0 0.0
        %455 = vmatprep.subr.mxu0 0.0
        %456 = vmatpush1.msra.mxu0 0.0
        %457 = vmatprep.subr.mxu0 0.0
        %458 = vmatpush1.msra.mxu0 0.0
        %459 = vmatprep.subr.mxu0 0.0
        %460 = vmatpush1.msra.mxu0 0.0
        %461 = vmatprep.subr.mxu0 0.0
        %v462 = vand.u32 %v178, 4294901760
        %463 = vmatpush1.msra.mxu0 %v462
        %464 = vmatprep.subr.mxu0 0.0
        %v465 = vand.u32 %v177, 4294901760
        %466 = vmatpush1.msra.mxu0 %v465
        %467 = vmatprep.subr.mxu0 0.0
        %v468 = vand.u32 %v176, 4294901760
        %469 = vmatpush1.msra.mxu0 %v468
        %470 = vmatprep.subr.mxu0 0.0
        %v471 = vand.u32 %v175, 4294901760
        %472 = vmatpush1.msra.mxu0 %v471
        %473 = vmatprep.subr.mxu0 0.0
        %474 = vmatpush2.msra.mxu0 0.0
        %475 = vmatprep.subr.mxu0 0.0
        %476 = vmatpush2.msra.mxu0 0.0
        %477 = vmatprep.subr.mxu0 0.0
        %478 = vmatpush2.msra.mxu0 0.0
        %479 = vmatprep.subr.mxu0 0.0
        %480 = vmatpush2.msra.mxu0 0.0
        %481 = vmatprep.subr.mxu0 0.0
        %482 = vmatpush2.msra.mxu0 0.0
        %483 = vmatprep.subr.mxu0 0.0
        %484 = vmatpush2.msra.mxu0 0.0
        %485 = vmatprep.subr.mxu0 0.0
        %486 = vmatpush2.msra.mxu0 0.0
        %487 = vmatprep.subr.mxu0 0.0
        %488 = vmatpush2.msra.mxu0 0.0
        %489 = vmatprep.subr.mxu0 0.0
        %490 = vmatpush2.msra.mxu0 0.0
        %491 = vmatprep.subr.mxu0 0.0
        %492 = vmatpush2.msra.mxu0 0.0
        %493 = vmatprep.subr.mxu0 0.0
        %494 = vmatpush2.msra.mxu0 0.0
        %495 = vmatprep.subr.mxu0 0.0
        %496 = vmatpush2.msra.mxu0 0.0
        %497 = vmatprep.subr.mxu0 0.0
        %498 = vmatpush2.msra.mxu0 0.0
        %499 = vmatprep.subr.mxu0 0.0
        %500 = vmatpush2.msra.mxu0 0.0
        %501 = vmatprep.subr.mxu0 0.0
        %502 = vmatpush2.msra.mxu0 0.0
        %503 = vmatprep.subr.mxu0 0.0
        %504 = vmatpush2.msra.mxu0 0.0
        %505 = vmatprep.mubr.f32.mxu0 0.0
        %v506 = vand.u32 %v185, 4294901760
        %v507 = vsub.f32 %v185, %v506
        %v508 = vand.u32 %v507, 4294901760
        %509 = vmatmul.mubr.f32.gmra.mxu0 %v508
        %v510 = vpop.f32.mrf.mxu0
        %v511 = vadd.f32 %v434, %v510
        %v512 = vpop.f32.mrf.mxu0
        %513 = vdwg.mxu0
        %514 = vmatprep.subr.mxu0 0.0
        %515 = vmatpush1.msra.mxu0 0.0
        %516 = vmatprep.subr.mxu0 0.0
        %517 = vmatpush1.msra.mxu0 0.0
        %518 = vmatprep.subr.mxu0 0.0
        %519 = vmatpush1.msra.mxu0 0.0
        %520 = vmatprep.subr.mxu0 0.0
        %521 = vmatpush1.msra.mxu0 0.0
        %522 = vmatprep.subr.mxu0 0.0
        %523 = vmatpush1.msra.mxu0 0.0
        %524 = vmatprep.subr.mxu0 0.0
        %525 = vmatpush1.msra.mxu0 0.0
        %526 = vmatprep.subr.mxu0 0.0
        %527 = vmatpush1.msra.mxu0 0.0
        %528 = vmatprep.subr.mxu0 0.0
        %529 = vmatpush1.msra.mxu0 0.0
        %530 = vmatprep.subr.mxu0 0.0
        %531 = vmatpush1.msra.mxu0 0.0
        %532 = vmatprep.subr.mxu0 0.0
        %533 = vmatpush1.msra.mxu0 0.0
        %534 = vmatprep.subr.mxu0 0.0
        %535 = vmatpush1.msra.mxu0 0.0
        %536 = vmatprep.subr.mxu0 0.0
        %537 = vmatpush1.msra.mxu0 0.0
        %538 = vmatprep.subr.mxu0 0.0
        %v539 = vand.u32 %v178, 4294901760
        %v540 = vsub.f32 %v178, %v539
        %v541 = vand.u32 %v540, 4294901760
        %542 = vmatpush1.msra.mxu0 %v541
        %543 = vmatprep.subr.mxu0 0.0
        %v544 = vand.u32 %v177, 4294901760
        %v545 = vsub.f32 %v177, %v544
        %v546 = vand.u32 %v545, 4294901760
        %547 = vmatpush1.msra.mxu0 %v546
        %548 = vmatprep.subr.mxu0 0.0
        %v549 = vand.u32 %v176, 4294901760
        %v550 = vsub.f32 %v176, %v549
        %v551 = vand.u32 %v550, 4294901760
        %552 = vmatpush1.msra.mxu0 %v551
        %553 = vmatprep.subr.mxu0 0.0
        %v554 = vand.u32 %v175, 4294901760
        %v555 = vsub.f32 %v175, %v554
        %v556 = vand.u32 %v555, 4294901760
        %557 = vmatpush1.msra.mxu0 %v556
        %558 = vmatprep.subr.mxu0 0.0
        %559 = vmatpush2.msra.mxu0 0.0
        %560 = vmatprep.subr.mxu0 0.0
        %561 = vmatpush2.msra.mxu0 0.0
        %562 = vmatprep.subr.mxu0 0.0
        %563 = vmatpush2.msra.mxu0 0.0
        %564 = vmatprep.subr.mxu0 0.0
        %565 = vmatpush2.msra.mxu0 0.0
        %566 = vmatprep.subr.mxu0 0.0
        %567 = vmatpush2.msra.mxu0 0.0
        %568 = vmatprep.subr.mxu0 0.0
        %569 = vmatpush2.msra.mxu0 0.0
        %570 = vmatprep.subr.mxu0 0.0
        %571 = vmatpush2.msra.mxu0 0.0
        %572 = vmatprep.subr.mxu0 0.0
        %573 = vmatpush2.msra.mxu0 0.0
        %574 = vmatprep.subr.mxu0 0.0
        %575 = vmatpush2.msra.mxu0 0.0
        %576 = vmatprep.subr.mxu0 0.0
        %577 = vmatpush2.msra.mxu0 0.0
        %578 = vmatprep.subr.mxu0 0.0
        %579 = vmatpush2.msra.mxu0 0.0
        %580 = vmatprep.subr.mxu0 0.0
        %581 = vmatpush2.msra.mxu0 0.0
        %582 = vmatprep.subr.mxu0 0.0
        %583 = vmatpush2.msra.mxu0 0.0
        %584 = vmatprep.subr.mxu0 0.0
        %585 = vmatpush2.msra.mxu0 0.0
        %586 = vmatprep.subr.mxu0 0.0
        %587 = vmatpush2.msra.mxu0 0.0
        %588 = vmatprep.subr.mxu0 0.0
        %589 = vmatpush2.msra.mxu0 0.0
        %590 = vmatprep.mubr.f32.mxu0 0.0
        %v591 = vand.u32 %v185, 4294901760
        %592 = vmatmul.mubr.f32.gmra.mxu0 %v591
        %v593 = vpop.f32.mrf.mxu0
        %v594 = vadd.f32 %v511, %v593
        %v595 = vpop.f32.mrf.mxu0
        %596 = vdwg.mxu0
        %597 = vmatprep.subr.mxu0 0.0
        %598 = vmatpush1.msra.mxu0 0.0
        %599 = vmatprep.subr.mxu0 0.0
        %600 = vmatpush1.msra.mxu0 0.0
        %601 = vmatprep.subr.mxu0 0.0
        %602 = vmatpush1.msra.mxu0 0.0
        %603 = vmatprep.subr.mxu0 0.0
        %604 = vmatpush1.msra.mxu0 0.0
        %605 = vmatprep.subr.mxu0 0.0
        %606 = vmatpush1.msra.mxu0 0.0
        %607 = vmatprep.subr.mxu0 0.0
        %608 = vmatpush1.msra.mxu0 0.0
        %609 = vmatprep.subr.mxu0 0.0
        %610 = vmatpush1.msra.mxu0 0.0
        %611 = vmatprep.subr.mxu0 0.0
        %612 = vmatpush1.msra.mxu0 0.0
        %613 = vmatprep.subr.mxu0 0.0
        %614 = vmatpush1.msra.mxu0 0.0
        %615 = vmatprep.subr.mxu0 0.0
        %616 = vmatpush1.msra.mxu0 0.0
        %617 = vmatprep.subr.mxu0 0.0
        %618 = vmatpush1.msra.mxu0 0.0
        %619 = vmatprep.subr.mxu0 0.0
        %620 = vmatpush1.msra.mxu0 0.0
        %621 = vmatprep.subr.mxu0 0.0
        %v622 = vand.u32 %v178, 4294901760
        %623 = vmatpush1.msra.mxu0 %v622
        %624 = vmatprep.subr.mxu0 0.0
        %v625 = vand.u32 %v177, 4294901760
        %626 = vmatpush1.msra.mxu0 %v625
        %627 = vmatprep.subr.mxu0 0.0
        %v628 = vand.u32 %v176, 4294901760
        %629 = vmatpush1.msra.mxu0 %v628
        %630 = vmatprep.subr.mxu0 0.0
        %v631 = vand.u32 %v175, 4294901760
        %632 = vmatpush1.msra.mxu0 %v631
        %633 = vmatprep.subr.mxu0 0.0
        %634 = vmatpush2.msra.mxu0 0.0
        %635 = vmatprep.subr.mxu0 0.0
        %636 = vmatpush2.msra.mxu0 0.0
        %637 = vmatprep.subr.mxu0 0.0
        %638 = vmatpush2.msra.mxu0 0.0
        %639 = vmatprep.subr.mxu0 0.0
        %640 = vmatpush2.msra.mxu0 0.0
        %641 = vmatprep.subr.mxu0 0.0
        %642 = vmatpush2.msra.mxu0 0.0
        %643 = vmatprep.subr.mxu0 0.0
        %644 = vmatpush2.msra.mxu0 0.0
        %645 = vmatprep.subr.mxu0 0.0
        %646 = vmatpush2.msra.mxu0 0.0
        %647 = vmatprep.subr.mxu0 0.0
        %648 = vmatpush2.msra.mxu0 0.0
        %649 = vmatprep.subr.mxu0 0.0
        %650 = vmatpush2.msra.mxu0 0.0
        %651 = vmatprep.subr.mxu0 0.0
        %652 = vmatpush2.msra.mxu0 0.0
        %653 = vmatprep.subr.mxu0 0.0
        %654 = vmatpush2.msra.mxu0 0.0
        %655 = vmatprep.subr.mxu0 0.0
        %656 = vmatpush2.msra.mxu0 0.0
        %657 = vmatprep.subr.mxu0 0.0
        %658 = vmatpush2.msra.mxu0 0.0
        %659 = vmatprep.subr.mxu0 0.0
        %660 = vmatpush2.msra.mxu0 0.0
        %661 = vmatprep.subr.mxu0 0.0
        %662 = vmatpush2.msra.mxu0 0.0
        %663 = vmatprep.subr.mxu0 0.0
        %664 = vmatpush2.msra.mxu0 0.0
        %665 = vmatprep.mubr.f32.mxu0 0.0
        %v666 = vand.u32 %v185, 4294901760
        %667 = vmatmul.mubr.f32.gmra.mxu0 %v666
        %v668 = vpop.f32.mrf.mxu0
        %v669 = vadd.f32 %v594, %v668
        %v670 = vpop.f32.mrf.mxu0
        %671 = vdwg.mxu0
        %v672 = vtanh.pop %v669
        %673 = vset.pattern.permute.xlu0 43
        %674 = vperm.xlu0 %673, %v173
        %v675 = vpop.permute.xlu0 %674
        %677 = vrot.lane.b32.xlu0 %v173, 96
        %v678 = vpop.permute.xlu0 %677
        %vm679 = vcmask 39936
        %v680 = vsel %vm679, %v678, 0
        %vm682 = vcmask 1044480
        %v684 = vsel %vm682, %v672, 0
        %686 = vmatprep.subr.mxu0 0.0
        %687 = vmatpush1.msra.mxu0 0.0
        %688 = vmatprep.subr.mxu0 0.0
        %689 = vmatpush1.msra.mxu0 0.0
        %690 = vmatprep.subr.mxu0 0.0
        %691 = vmatpush1.msra.mxu0 0.0
        %692 = vmatprep.subr.mxu0 0.0
        %693 = vmatpush1.msra.mxu0 0.0
        %694 = vmatprep.subr.mxu0 0.0
        %695 = vmatpush1.msra.mxu0 0.0
        %696 = vmatprep.subr.mxu0 0.0
        %697 = vmatpush1.msra.mxu0 0.0
        %698 = vmatprep.subr.mxu0 0.0
        %699 = vmatpush1.msra.mxu0 0.0
        %700 = vmatprep.subr.mxu0 0.0
        %701 = vmatpush1.msra.mxu0 0.0
        %702 = vmatprep.subr.mxu0 0.0
        %703 = vmatpush1.msra.mxu0 0.0
        %704 = vmatprep.subr.mxu0 0.0
        %705 = vmatpush1.msra.mxu0 0.0
        %706 = vmatprep.subr.mxu0 0.0
        %707 = vmatpush1.msra.mxu0 0.0
        %708 = vmatprep.subr.mxu0 0.0
        %709 = vmatpush1.msra.mxu0 0.0
        %710 = vmatprep.subr.mxu0 0.0
        %711 = vmatpush1.msra.mxu0 0.0
        %712 = vmatprep.subr.mxu0 0.0
        %713 = vmatpush1.msra.mxu0 0.0
        %714 = vmatprep.subr.mxu0 0.0
        %715 = vmatpush1.msra.mxu0 0.0
        %716 = vmatprep.subr.mxu0 0.0
        %v717 = vand.u32 %v684, 4294901760
        %718 = vmatpush1.msra.mxu0 %v717
        %719 = vmatprep.subr.mxu0 0.0
        %720 = vmatpush2.msra.mxu0 0.0
        %721 = vmatprep.subr.mxu0 0.0
        %722 = vmatpush2.msra.mxu0 0.0
        %723 = vmatprep.subr.mxu0 0.0
        %724 = vmatpush2.msra.mxu0 0.0
        %725 = vmatprep.subr.mxu0 0.0
        %726 = vmatpush2.msra.mxu0 0.0
        %727 = vmatprep.subr.mxu0 0.0
        %728 = vmatpush2.msra.mxu0 0.0
        %729 = vmatprep.subr.mxu0 0.0
        %730 = vmatpush2.msra.mxu0 0.0
        %731 = vmatprep.subr.mxu0 0.0
        %732 = vmatpush2.msra.mxu0 0.0
        %733 = vmatprep.subr.mxu0 0.0
        %734 = vmatpush2.msra.mxu0 0.0
        %735 = vmatprep.subr.mxu0 0.0
        %736 = vmatpush2.msra.mxu0 0.0
        %737 = vmatprep.subr.mxu0 0.0
        %738 = vmatpush2.msra.mxu0 0.0
        %739 = vmatprep.subr.mxu0 0.0
        %740 = vmatpush2.msra.mxu0 0.0
        %741 = vmatprep.subr.mxu0 0.0
        %742 = vmatpush2.msra.mxu0 0.0
        %743 = vmatprep.subr.mxu0 0.0
        %744 = vmatpush2.msra.mxu0 0.0
        %745 = vmatprep.subr.mxu0 0.0
        %746 = vmatpush2.msra.mxu0 0.0
        %747 = vmatprep.subr.mxu0 0.0
        %748 = vmatpush2.msra.mxu0 0.0
        %749 = vmatprep.subr.mxu0 0.0
        %750 = vmatpush2.msra.mxu0 0.0
        %751 = vmatprep.mubr.f32.mxu0 0.0
        %v752 = vand.u32 %v680, 4294901760
        %v753 = vsub.f32 %v680, %v752
        %v754 = vand.u32 %v753, 4294901760
        %v755 = vsub.f32 %v753, %v754
        %v756 = vand.u32 %v755, 4294901760
        %757 = vmatmul.mubr.f32.gmra.mxu0 %v756
        %v758 = vpop.f32.mrf.mxu0
        %v759 = vadd.f32 %v675, %v758
        %v760 = vpop.f32.mrf.mxu0
        %761 = vdwg.mxu0
        %762 = vmatprep.subr.mxu0 0.0
        %763 = vmatpush1.msra.mxu0 0.0
        %764 = vmatprep.subr.mxu0 0.0
        %765 = vmatpush1.msra.mxu0 0.0
        %766 = vmatprep.subr.mxu0 0.0
        %767 = vmatpush1.msra.mxu0 0.0
        %768 = vmatprep.subr.mxu0 0.0
        %769 = vmatpush1.msra.mxu0 0.0
        %770 = vmatprep.subr.mxu0 0.0
        %771 = vmatpush1.msra.mxu0 0.0
        %772 = vmatprep.subr.mxu0 0.0
        %773 = vmatpush1.msra.mxu0 0.0
        %774 = vmatprep.subr.mxu0 0.0
        %775 = vmatpush1.msra.mxu0 0.0
        %776 = vmatprep.subr.mxu0 0.0
        %777 = vmatpush1.msra.mxu0 0.0
        %778 = vmatprep.subr.mxu0 0.0
        %779 = vmatpush1.msra.mxu0 0.0
        %780 = vmatprep.subr.mxu0 0.0
        %781 = vmatpush1.msra.mxu0 0.0
        %782 = vmatprep.subr.mxu0 0.0
        %783 = vmatpush1.msra.mxu0 0.0
        %784 = vmatprep.subr.mxu0 0.0
        %785 = vmatpush1.msra.mxu0 0.0
        %786 = vmatprep.subr.mxu0 0.0
        %787 = vmatpush1.msra.mxu0 0.0
        %788 = vmatprep.subr.mxu0 0.0
        %789 = vmatpush1.msra.mxu0 0.0
        %790 = vmatprep.subr.mxu0 0.0
        %791 = vmatpush1.msra.mxu0 0.0
        %792 = vmatprep.subr.mxu0 0.0
        %v793 = vand.u32 %v684, 4294901760
        %v794 = vsub.f32 %v684, %v793
        %v795 = vand.u32 %v794, 4294901760
        %v796 = vsub.f32 %v794, %v795
        %v797 = vand.u32 %v796, 4294901760
        %798 = vmatpush1.msra.mxu0 %v797
        %799 = vmatprep.subr.mxu0 0.0
        %800 = vmatpush2.msra.mxu0 0.0
        %801 = vmatprep.subr.mxu0 0.0
        %802 = vmatpush2.msra.mxu0 0.0
        %803 = vmatprep.subr.mxu0 0.0
        %804 = vmatpush2.msra.mxu0 0.0
        %805 = vmatprep.subr.mxu0 0.0
        %806 = vmatpush2.msra.mxu0 0.0
        %807 = vmatprep.subr.mxu0 0.0
        %808 = vmatpush2.msra.mxu0 0.0
        %809 = vmatprep.subr.mxu0 0.0
        %810 = vmatpush2.msra.mxu0 0.0
        %811 = vmatprep.subr.mxu0 0.0
        %812 = vmatpush2.msra.mxu0 0.0
        %813 = vmatprep.subr.mxu0 0.0
        %814 = vmatpush2.msra.mxu0 0.0
        %815 = vmatprep.subr.mxu0 0.0
        %816 = vmatpush2.msra.mxu0 0.0
        %817 = vmatprep.subr.mxu0 0.0
        %818 = vmatpush2.msra.mxu0 0.0
        %819 = vmatprep.subr.mxu0 0.0
        %820 = vmatpush2.msra.mxu0 0.0
        %821 = vmatprep.subr.mxu0 0.0
        %822 = vmatpush2.msra.mxu0 0.0
        %823 = vmatprep.subr.mxu0 0.0
        %824 = vmatpush2.msra.mxu0 0.0
        %825 = vmatprep.subr.mxu0 0.0
        %826 = vmatpush2.msra.mxu0 0.0
        %827 = vmatprep.subr.mxu0 0.0
        %828 = vmatpush2.msra.mxu0 0.0
        %829 = vmatprep.subr.mxu0 0.0
        %830 = vmatpush2.msra.mxu0 0.0
        %831 = vmatprep.mubr.f32.mxu0 0.0
        %v832 = vand.u32 %v680, 4294901760
        %833 = vmatmul.mubr.f32.gmra.mxu0 %v832
        %v834 = vpop.f32.mrf.mxu0
        %v835 = vadd.f32 %v759, %v834
        %v836 = vpop.f32.mrf.mxu0
        %837 = vdwg.mxu0
        %838 = vmatprep.subr.mxu0 0.0
        %839 = vmatpush1.msra.mxu0 0.0
        %840 = vmatprep.subr.mxu0 0.0
        %841 = vmatpush1.msra.mxu0 0.0
        %842 = vmatprep.subr.mxu0 0.0
        %843 = vmatpush1.msra.mxu0 0.0
        %844 = vmatprep.subr.mxu0 0.0
        %845 = vmatpush1.msra.mxu0 0.0
        %846 = vmatprep.subr.mxu0 0.0
        %847 = vmatpush1.msra.mxu0 0.0
        %848 = vmatprep.subr.mxu0 0.0
        %849 = vmatpush1.msra.mxu0 0.0
        %850 = vmatprep.subr.mxu0 0.0
        %851 = vmatpush1.msra.mxu0 0.0
        %852 = vmatprep.subr.mxu0 0.0
        %853 = vmatpush1.msra.mxu0 0.0
        %854 = vmatprep.subr.mxu0 0.0
        %855 = vmatpush1.msra.mxu0 0.0
        %856 = vmatprep.subr.mxu0 0.0
        %857 = vmatpush1.msra.mxu0 0.0
        %858 = vmatprep.subr.mxu0 0.0
        %859 = vmatpush1.msra.mxu0 0.0
        %860 = vmatprep.subr.mxu0 0.0
        %861 = vmatpush1.msra.mxu0 0.0
        %862 = vmatprep.subr.mxu0 0.0
        %863 = vmatpush1.msra.mxu0 0.0
        %864 = vmatprep.subr.mxu0 0.0
        %865 = vmatpush1.msra.mxu0 0.0
        %866 = vmatprep.subr.mxu0 0.0
        %867 = vmatpush1.msra.mxu0 0.0
        %868 = vmatprep.subr.mxu0 0.0
        %v869 = vand.u32 %v684, 4294901760
        %v870 = vsub.f32 %v684, %v869
        %871 = vmatpush1.msra.mxu0 %v870
        %872 = vmatprep.subr.mxu0 0.0
        %873 = vmatpush2.msra.mxu0 0.0
        %874 = vmatprep.subr.mxu0 0.0
        %875 = vmatpush2.msra.mxu0 0.0
        %876 = vmatprep.subr.mxu0 0.0
        %877 = vmatpush2.msra.mxu0 0.0
        %878 = vmatprep.subr.mxu0 0.0
        %879 = vmatpush2.msra.mxu0 0.0
        %880 = vmatprep.subr.mxu0 0.0
        %881 = vmatpush2.msra.mxu0 0.0
        %882 = vmatprep.subr.mxu0 0.0
        %883 = vmatpush2.msra.mxu0 0.0
        %884 = vmatprep.subr.mxu0 0.0
        %885 = vmatpush2.msra.mxu0 0.0
        %886 = vmatprep.subr.mxu0 0.0
        %887 = vmatpush2.msra.mxu0 0.0
        %888 = vmatprep.subr.mxu0 0.0
        %889 = vmatpush2.msra.mxu0 0.0
        %890 = vmatprep.subr.mxu0 0.0
        %891 = vmatpush2.msra.mxu0 0.0
        %892 = vmatprep.subr.mxu0 0.0
        %893 = vmatpush2.msra.mxu0 0.0
        %894 = vmatprep.subr.mxu0 0.0
        %895 = vmatpush2.msra.mxu0 0.0
        %896 = vmatprep.subr.mxu0 0.0
        %897 = vmatpush2.msra.mxu0 0.0
        %898 = vmatprep.subr.mxu0 0.0
        %899 = vmatpush2.msra.mxu0 0.0
        %900 = vmatprep.subr.mxu0 0.0
        %901 = vmatpush2.msra.mxu0 0.0
        %902 = vmatprep.subr.mxu0 0.0
        %903 = vmatpush2.msra.mxu0 0.0
        %904 = vmatprep.mubr.f32.mxu0 0.0
        %v905 = vand.u32 %v680, 4294901760
        %v906 = vsub.f32 %v680, %v905
        %907 = vmatmul.mubr.f32.gmra.mxu0 %v906
        %v908 = vpop.f32.mrf.mxu0
        %v909 = vadd.f32 %v835, %v908
        %v910 = vpop.f32.mrf.mxu0
        %911 = vdwg.mxu0
        %912 = vmatprep.subr.mxu0 0.0
        %913 = vmatpush1.msra.mxu0 0.0
        %914 = vmatprep.subr.mxu0 0.0
        %915 = vmatpush1.msra.mxu0 0.0
        %916 = vmatprep.subr.mxu0 0.0
        %917 = vmatpush1.msra.mxu0 0.0
        %918 = vmatprep.subr.mxu0 0.0
        %919 = vmatpush1.msra.mxu0 0.0
        %920 = vmatprep.subr.mxu0 0.0
        %921 = vmatpush1.msra.mxu0 0.0
        %922 = vmatprep.subr.mxu0 0.0
        %923 = vmatpush1.msra.mxu0 0.0
        %924 = vmatprep.subr.mxu0 0.0
        %925 = vmatpush1.msra.mxu0 0.0
        %926 = vmatprep.subr.mxu0 0.0
        %927 = vmatpush1.msra.mxu0 0.0
        %928 = vmatprep.subr.mxu0 0.0
        %929 = vmatpush1.msra.mxu0 0.0
        %930 = vmatprep.subr.mxu0 0.0
        %931 = vmatpush1.msra.mxu0 0.0
        %932 = vmatprep.subr.mxu0 0.0
        %933 = vmatpush1.msra.mxu0 0.0
        %934 = vmatprep.subr.mxu0 0.0
        %935 = vmatpush1.msra.mxu0 0.0
        %936 = vmatprep.subr.mxu0 0.0
        %937 = vmatpush1.msra.mxu0 0.0
        %938 = vmatprep.subr.mxu0 0.0
        %939 = vmatpush1.msra.mxu0 0.0
        %940 = vmatprep.subr.mxu0 0.0
        %941 = vmatpush1.msra.mxu0 0.0
        %942 = vmatprep.subr.mxu0 0.0
        %v943 = vand.u32 %v684, 4294901760
        %944 = vmatpush1.msra.mxu0 %v943
        %945 = vmatprep.subr.mxu0 0.0
        %946 = vmatpush2.msra.mxu0 0.0
        %947 = vmatprep.subr.mxu0 0.0
        %948 = vmatpush2.msra.mxu0 0.0
        %949 = vmatprep.subr.mxu0 0.0
        %950 = vmatpush2.msra.mxu0 0.0
        %951 = vmatprep.subr.mxu0 0.0
        %952 = vmatpush2.msra.mxu0 0.0
        %953 = vmatprep.subr.mxu0 0.0
        %954 = vmatpush2.msra.mxu0 0.0
        %955 = vmatprep.subr.mxu0 0.0
        %956 = vmatpush2.msra.mxu0 0.0
        %957 = vmatprep.subr.mxu0 0.0
        %958 = vmatpush2.msra.mxu0 0.0
        %959 = vmatprep.subr.mxu0 0.0
        %960 = vmatpush2.msra.mxu0 0.0
        %961 = vmatprep.subr.mxu0 0.0
        %962 = vmatpush2.msra.mxu0 0.0
        %963 = vmatprep.subr.mxu0 0.0
        %964 = vmatpush2.msra.mxu0 0.0
        %965 = vmatprep.subr.mxu0 0.0
        %966 = vmatpush2.msra.mxu0 0.0
        %967 = vmatprep.subr.mxu0 0.0
        %968 = vmatpush2.msra.mxu0 0.0
        %969 = vmatprep.subr.mxu0 0.0
        %970 = vmatpush2.msra.mxu0 0.0
        %971 = vmatprep.subr.mxu0 0.0
        %972 = vmatpush2.msra.mxu0 0.0
        %973 = vmatprep.subr.mxu0 0.0
        %974 = vmatpush2.msra.mxu0 0.0
        %975 = vmatprep.subr.mxu0 0.0
        %976 = vmatpush2.msra.mxu0 0.0
        %977 = vmatprep.mubr.f32.mxu0 0.0
        %v978 = vand.u32 %v680, 4294901760
        %v979 = vsub.f32 %v680, %v978
        %v980 = vand.u32 %v979, 4294901760
        %981 = vmatmul.mubr.f32.gmra.mxu0 %v980
        %v982 = vpop.f32.mrf.mxu0
        %v983 = vadd.f32 %v909, %v982
        %v984 = vpop.f32.mrf.mxu0
        %985 = vdwg.mxu0
        %986 = vmatprep.subr.mxu0 0.0
        %987 = vmatpush1.msra.mxu0 0.0
        %988 = vmatprep.subr.mxu0 0.0
        %989 = vmatpush1.msra.mxu0 0.0
        %990 = vmatprep.subr.mxu0 0.0
        %991 = vmatpush1.msra.mxu0 0.0
        %992 = vmatprep.subr.mxu0 0.0
        %993 = vmatpush1.msra.mxu0 0.0
        %994 = vmatprep.subr.mxu0 0.0
        %995 = vmatpush1.msra.mxu0 0.0
        %996 = vmatprep.subr.mxu0 0.0
        %997 = vmatpush1.msra.mxu0 0.0
        %998 = vmatprep.subr.mxu0 0.0
        %999 = vmatpush1.msra.mxu0 0.0
        %1000 = vmatprep.subr.mxu0 0.0
        %1001 = vmatpush1.msra.mxu0 0.0
        %1002 = vmatprep.subr.mxu0 0.0
        %1003 = vmatpush1.msra.mxu0 0.0
        %1004 = vmatprep.subr.mxu0 0.0
        %1005 = vmatpush1.msra.mxu0 0.0
        %1006 = vmatprep.subr.mxu0 0.0
        %1007 = vmatpush1.msra.mxu0 0.0
        %1008 = vmatprep.subr.mxu0 0.0
        %1009 = vmatpush1.msra.mxu0 0.0
        %1010 = vmatprep.subr.mxu0 0.0
        %1011 = vmatpush1.msra.mxu0 0.0
        %1012 = vmatprep.subr.mxu0 0.0
        %1013 = vmatpush1.msra.mxu0 0.0
        %1014 = vmatprep.subr.mxu0 0.0
        %1015 = vmatpush1.msra.mxu0 0.0
        %1016 = vmatprep.subr.mxu0 0.0
        %v1017 = vand.u32 %v684, 4294901760
        %v1018 = vsub.f32 %v684, %v1017
        %v1019 = vand.u32 %v1018, 4294901760
        %1020 = vmatpush1.msra.mxu0 %v1019
        %1021 = vmatprep.subr.mxu0 0.0
        %1022 = vmatpush2.msra.mxu0 0.0
        %1023 = vmatprep.subr.mxu0 0.0
        %1024 = vmatpush2.msra.mxu0 0.0
        %1025 = vmatprep.subr.mxu0 0.0
        %1026 = vmatpush2.msra.mxu0 0.0
        %1027 = vmatprep.subr.mxu0 0.0
        %1028 = vmatpush2.msra.mxu0 0.0
        %1029 = vmatprep.subr.mxu0 0.0
        %1030 = vmatpush2.msra.mxu0 0.0
        %1031 = vmatprep.subr.mxu0 0.0
        %1032 = vmatpush2.msra.mxu0 0.0
        %1033 = vmatprep.subr.mxu0 0.0
        %1034 = vmatpush2.msra.mxu0 0.0
        %1035 = vmatprep.subr.mxu0 0.0
        %1036 = vmatpush2.msra.mxu0 0.0
        %1037 = vmatprep.subr.mxu0 0.0
        %1038 = vmatpush2.msra.mxu0 0.0
        %1039 = vmatprep.subr.mxu0 0.0
        %1040 = vmatpush2.msra.mxu0 0.0
        %1041 = vmatprep.subr.mxu0 0.0
        %1042 = vmatpush2.msra.mxu0 0.0
        %1043 = vmatprep.subr.mxu0 0.0
        %1044 = vmatpush2.msra.mxu0 0.0
        %1045 = vmatprep.subr.mxu0 0.0
        %1046 = vmatpush2.msra.mxu0 0.0
        %1047 = vmatprep.subr.mxu0 0.0
        %1048 = vmatpush2.msra.mxu0 0.0
        %1049 = vmatprep.subr.mxu0 0.0
        %1050 = vmatpush2.msra.mxu0 0.0
        %1051 = vmatprep.subr.mxu0 0.0
        %1052 = vmatpush2.msra.mxu0 0.0
        %1053 = vmatprep.mubr.f32.mxu0 0.0
        %v1054 = vand.u32 %v680, 4294901760
        %1055 = vmatmul.mubr.f32.gmra.mxu0 %v1054
        %v1056 = vpop.f32.mrf.mxu0
        %v1057 = vadd.f32 %v983, %v1056
        %v1058 = vpop.f32.mrf.mxu0
        %1059 = vdwg.mxu0
        %1060 = vmatprep.subr.mxu0 0.0
        %1061 = vmatpush1.msra.mxu0 0.0
        %1062 = vmatprep.subr.mxu0 0.0
        %1063 = vmatpush1.msra.mxu0 0.0
        %1064 = vmatprep.subr.mxu0 0.0
        %1065 = vmatpush1.msra.mxu0 0.0
        %1066 = vmatprep.subr.mxu0 0.0
        %1067 = vmatpush1.msra.mxu0 0.0
        %1068 = vmatprep.subr.mxu0 0.0
        %1069 = vmatpush1.msra.mxu0 0.0
        %1070 = vmatprep.subr.mxu0 0.0
        %1071 = vmatpush1.msra.mxu0 0.0
        %1072 = vmatprep.subr.mxu0 0.0
        %1073 = vmatpush1.msra.mxu0 0.0
        %1074 = vmatprep.subr.mxu0 0.0
        %1075 = vmatpush1.msra.mxu0 0.0
        %1076 = vmatprep.subr.mxu0 0.0
        %1077 = vmatpush1.msra.mxu0 0.0
        %1078 = vmatprep.subr.mxu0 0.0
        %1079 = vmatpush1.msra.mxu0 0.0
        %1080 = vmatprep.subr.mxu0 0.0
        %1081 = vmatpush1.msra.mxu0 0.0
        %1082 = vmatprep.subr.mxu0 0.0
        %1083 = vmatpush1.msra.mxu0 0.0
        %1084 = vmatprep.subr.mxu0 0.0
        %1085 = vmatpush1.msra.mxu0 0.0
        %1086 = vmatprep.subr.mxu0 0.0
        %1087 = vmatpush1.msra.mxu0 0.0
        %1088 = vmatprep.subr.mxu0 0.0
        %1089 = vmatpush1.msra.mxu0 0.0
        %1090 = vmatprep.subr.mxu0 0.0
        %v1091 = vand.u32 %v684, 4294901760
        %1092 = vmatpush1.msra.mxu0 %v1091
        %1093 = vmatprep.subr.mxu0 0.0
        %1094 = vmatpush2.msra.mxu0 0.0
        %1095 = vmatprep.subr.mxu0 0.0
        %1096 = vmatpush2.msra.mxu0 0.0
        %1097 = vmatprep.subr.mxu0 0.0
        %1098 = vmatpush2.msra.mxu0 0.0
        %1099 = vmatprep.subr.mxu0 0.0
        %1100 = vmatpush2.msra.mxu0 0.0
        %1101 = vmatprep.subr.mxu0 0.0
        %1102 = vmatpush2.msra.mxu0 0.0
        %1103 = vmatprep.subr.mxu0 0.0
        %1104 = vmatpush2.msra.mxu0 0.0
        %1105 = vmatprep.subr.mxu0 0.0
        %1106 = vmatpush2.msra.mxu0 0.0
        %1107 = vmatprep.subr.mxu0 0.0
        %1108 = vmatpush2.msra.mxu0 0.0
        %1109 = vmatprep.subr.mxu0 0.0
        %1110 = vmatpush2.msra.mxu0 0.0
        %1111 = vmatprep.subr.mxu0 0.0
        %1112 = vmatpush2.msra.mxu0 0.0
        %1113 = vmatprep.subr.mxu0 0.0
        %1114 = vmatpush2.msra.mxu0 0.0
        %1115 = vmatprep.subr.mxu0 0.0
        %1116 = vmatpush2.msra.mxu0 0.0
        %1117 = vmatprep.subr.mxu0 0.0
        %1118 = vmatpush2.msra.mxu0 0.0
        %1119 = vmatprep.subr.mxu0 0.0
        %1120 = vmatpush2.msra.mxu0 0.0
        %1121 = vmatprep.subr.mxu0 0.0
        %1122 = vmatpush2.msra.mxu0 0.0
        %1123 = vmatprep.subr.mxu0 0.0
        %1124 = vmatpush2.msra.mxu0 0.0
        %1125 = vmatprep.mubr.f32.mxu0 0.0
        %v1126 = vand.u32 %v680, 4294901760
        %1127 = vmatmul.mubr.f32.gmra.mxu0 %v1126
        %v1128 = vpop.f32.mrf.mxu0
        %v1129 = vadd.f32 %v1057, %v1128
        %v1130 = vpop.f32.mrf.mxu0
        %1131 = vdwg.mxu0
        %v1132 = vtanh.pop %v1129
        %1134 = vset.pattern.permute.xlu0 44
        %1135 = vperm.xlu0 %1134, %v174
        %v1136 = vpop.permute.xlu0 %1135
        %1138 = vrot.lane.b32.xlu0 %v174, 91
        %v1139 = vpop.permute.xlu0 %1138
        %v1140 = vsel %vm679, %v1139, 0
        %v1143 = vsel %vm682, %v1132, 0
        %1145 = vmatprep.subr.mxu0 0.0
        %1146 = vmatpush1.msra.mxu0 0.0
        %1147 = vmatprep.subr.mxu0 0.0
        %1148 = vmatpush1.msra.mxu0 0.0
        %1149 = vmatprep.subr.mxu0 0.0
        %1150 = vmatpush1.msra.mxu0 0.0
        %1151 = vmatprep.subr.mxu0 0.0
        %1152 = vmatpush1.msra.mxu0 0.0
        %1153 = vmatprep.subr.mxu0 0.0
        %1154 = vmatpush1.msra.mxu0 0.0
        %1155 = vmatprep.subr.mxu0 0.0
        %1156 = vmatpush1.msra.mxu0 0.0
        %1157 = vmatprep.subr.mxu0 0.0
        %1158 = vmatpush1.msra.mxu0 0.0
        %1159 = vmatprep.subr.mxu0 0.0
        %1160 = vmatpush1.msra.mxu0 0.0
        %1161 = vmatprep.subr.mxu0 0.0
        %1162 = vmatpush1.msra.mxu0 0.0
        %1163 = vmatprep.subr.mxu0 0.0
        %1164 = vmatpush1.msra.mxu0 0.0
        %1165 = vmatprep.subr.mxu0 0.0
        %1166 = vmatpush1.msra.mxu0 0.0
        %1167 = vmatprep.subr.mxu0 0.0
        %1168 = vmatpush1.msra.mxu0 0.0
        %1169 = vmatprep.subr.mxu0 0.0
        %1170 = vmatpush1.msra.mxu0 0.0
        %1171 = vmatprep.subr.mxu0 0.0
        %1172 = vmatpush1.msra.mxu0 0.0
        %1173 = vmatprep.subr.mxu0 0.0
        %1174 = vmatpush1.msra.mxu0 0.0
        %1175 = vmatprep.subr.mxu0 0.0
        %v1176 = vand.u32 %v1143, 4294901760
        %1177 = vmatpush1.msra.mxu0 %v1176
        %1178 = vmatprep.subr.mxu0 0.0
        %1179 = vmatpush2.msra.mxu0 0.0
        %1180 = vmatprep.subr.mxu0 0.0
        %1181 = vmatpush2.msra.mxu0 0.0
        %1182 = vmatprep.subr.mxu0 0.0
        %1183 = vmatpush2.msra.mxu0 0.0
        %1184 = vmatprep.subr.mxu0 0.0
        %1185 = vmatpush2.msra.mxu0 0.0
        %1186 = vmatprep.subr.mxu0 0.0
        %1187 = vmatpush2.msra.mxu0 0.0
        %1188 = vmatprep.subr.mxu0 0.0
        %1189 = vmatpush2.msra.mxu0 0.0
        %1190 = vmatprep.subr.mxu0 0.0
        %1191 = vmatpush2.msra.mxu0 0.0
        %1192 = vmatprep.subr.mxu0 0.0
        %1193 = vmatpush2.msra.mxu0 0.0
        %1194 = vmatprep.subr.mxu0 0.0
        %1195 = vmatpush2.msra.mxu0 0.0
        %1196 = vmatprep.subr.mxu0 0.0
        %1197 = vmatpush2.msra.mxu0 0.0
        %1198 = vmatprep.subr.mxu0 0.0
        %1199 = vmatpush2.msra.mxu0 0.0
        %1200 = vmatprep.subr.mxu0 0.0
        %1201 = vmatpush2.msra.mxu0 0.0
        %1202 = vmatprep.subr.mxu0 0.0
        %1203 = vmatpush2.msra.mxu0 0.0
        %1204 = vmatprep.subr.mxu0 0.0
        %1205 = vmatpush2.msra.mxu0 0.0
        %1206 = vmatprep.subr.mxu0 0.0
        %1207 = vmatpush2.msra.mxu0 0.0
        %1208 = vmatprep.subr.mxu0 0.0
        %1209 = vmatpush2.msra.mxu0 0.0
        %1210 = vmatprep.mubr.f32.mxu0 0.0
        %v1211 = vand.u32 %v1140, 4294901760
        %v1212 = vsub.f32 %v1140, %v1211
        %v1213 = vand.u32 %v1212, 4294901760
        %v1214 = vsub.f32 %v1212, %v1213
        %v1215 = vand.u32 %v1214, 4294901760
        %1216 = vmatmul.mubr.f32.gmra.mxu0 %v1215
        %v1217 = vpop.f32.mrf.mxu0
        %v1218 = vadd.f32 %v1136, %v1217
        %v1219 = vpop.f32.mrf.mxu0
        %1220 = vdwg.mxu0
        %1221 = vmatprep.subr.mxu0 0.0
        %1222 = vmatpush1.msra.mxu0 0.0
        %1223 = vmatprep.subr.mxu0 0.0
        %1224 = vmatpush1.msra.mxu0 0.0
        %1225 = vmatprep.subr.mxu0 0.0
        %1226 = vmatpush1.msra.mxu0 0.0
        %1227 = vmatprep.subr.mxu0 0.0
        %1228 = vmatpush1.msra.mxu0 0.0
        %1229 = vmatprep.subr.mxu0 0.0
        %1230 = vmatpush1.msra.mxu0 0.0
        %1231 = vmatprep.subr.mxu0 0.0
        %1232 = vmatpush1.msra.mxu0 0.0
        %1233 = vmatprep.subr.mxu0 0.0
        %1234 = vmatpush1.msra.mxu0 0.0
        %1235 = vmatprep.subr.mxu0 0.0
        %1236 = vmatpush1.msra.mxu0 0.0
        %1237 = vmatprep.subr.mxu0 0.0
        %1238 = vmatpush1.msra.mxu0 0.0
        %1239 = vmatprep.subr.mxu0 0.0
        %1240 = vmatpush1.msra.mxu0 0.0
        %1241 = vmatprep.subr.mxu0 0.0
        %1242 = vmatpush1.msra.mxu0 0.0
        %1243 = vmatprep.subr.mxu0 0.0
        %1244 = vmatpush1.msra.mxu0 0.0
        %1245 = vmatprep.subr.mxu0 0.0
        %1246 = vmatpush1.msra.mxu0 0.0
        %1247 = vmatprep.subr.mxu0 0.0
        %1248 = vmatpush1.msra.mxu0 0.0
        %1249 = vmatprep.subr.mxu0 0.0
        %1250 = vmatpush1.msra.mxu0 0.0
        %1251 = vmatprep.subr.mxu0 0.0
        %v1252 = vand.u32 %v1143, 4294901760
        %v1253 = vsub.f32 %v1143, %v1252
        %v1254 = vand.u32 %v1253, 4294901760
        %v1255 = vsub.f32 %v1253, %v1254
        %v1256 = vand.u32 %v1255, 4294901760
        %1257 = vmatpush1.msra.mxu0 %v1256
        %1258 = vmatprep.subr.mxu0 0.0
        %1259 = vmatpush2.msra.mxu0 0.0
        %1260 = vmatprep.subr.mxu0 0.0
        %1261 = vmatpush2.msra.mxu0 0.0
        %1262 = vmatprep.subr.mxu0 0.0
        %1263 = vmatpush2.msra.mxu0 0.0
        %1264 = vmatprep.subr.mxu0 0.0
        %1265 = vmatpush2.msra.mxu0 0.0
        %1266 = vmatprep.subr.mxu0 0.0
        %1267 = vmatpush2.msra.mxu0 0.0
        %1268 = vmatprep.subr.mxu0 0.0
        %1269 = vmatpush2.msra.mxu0 0.0
        %1270 = vmatprep.subr.mxu0 0.0
        %1271 = vmatpush2.msra.mxu0 0.0
        %1272 = vmatprep.subr.mxu0 0.0
        %1273 = vmatpush2.msra.mxu0 0.0
        %1274 = vmatprep.subr.mxu0 0.0
        %1275 = vmatpush2.msra.mxu0 0.0
        %1276 = vmatprep.subr.mxu0 0.0
        %1277 = vmatpush2.msra.mxu0 0.0
        %1278 = vmatprep.subr.mxu0 0.0
        %1279 = vmatpush2.msra.mxu0 0.0
        %1280 = vmatprep.subr.mxu0 0.0
        %1281 = vmatpush2.msra.mxu0 0.0
        %1282 = vmatprep.subr.mxu0 0.0
        %1283 = vmatpush2.msra.mxu0 0.0
        %1284 = vmatprep.subr.mxu0 0.0
        %1285 = vmatpush2.msra.mxu0 0.0
        %1286 = vmatprep.subr.mxu0 0.0
        %1287 = vmatpush2.msra.mxu0 0.0
        %1288 = vmatprep.subr.mxu0 0.0
        %1289 = vmatpush2.msra.mxu0 0.0
        %1290 = vmatprep.mubr.f32.mxu0 0.0
        %v1291 = vand.u32 %v1140, 4294901760
        %1292 = vmatmul.mubr.f32.gmra.mxu0 %v1291
        %v1293 = vpop.f32.mrf.mxu0
        %v1294 = vadd.f32 %v1218, %v1293
        %v1295 = vpop.f32.mrf.mxu0
        %1296 = vdwg.mxu0
        %1297 = vmatprep.subr.mxu0 0.0
        %1298 = vmatpush1.msra.mxu0 0.0
        %1299 = vmatprep.subr.mxu0 0.0
        %1300 = vmatpush1.msra.mxu0 0.0
        %1301 = vmatprep.subr.mxu0 0.0
        %1302 = vmatpush1.msra.mxu0 0.0
        %1303 = vmatprep.subr.mxu0 0.0
        %1304 = vmatpush1.msra.mxu0 0.0
        %1305 = vmatprep.subr.mxu0 0.0
        %1306 = vmatpush1.msra.mxu0 0.0
        %1307 = vmatprep.subr.mxu0 0.0
        %1308 = vmatpush1.msra.mxu0 0.0
        %1309 = vmatprep.subr.mxu0 0.0
        %1310 = vmatpush1.msra.mxu0 0.0
        %1311 = vmatprep.subr.mxu0 0.0
        %1312 = vmatpush1.msra.mxu0 0.0
        %1313 = vmatprep.subr.mxu0 0.0
        %1314 = vmatpush1.msra.mxu0 0.0
        %1315 = vmatprep.subr.mxu0 0.0
        %1316 = vmatpush1.msra.mxu0 0.0
        %1317 = vmatprep.subr.mxu0 0.0
        %1318 = vmatpush1.msra.mxu0 0.0
        %1319 = vmatprep.subr.mxu0 0.0
        %1320 = vmatpush1.msra.mxu0 0.0
        %1321 = vmatprep.subr.mxu0 0.0
        %1322 = vmatpush1.msra.mxu0 0.0
        %1323 = vmatprep.subr.mxu0 0.0
        %1324 = vmatpush1.msra.mxu0 0.0
        %1325 = vmatprep.subr.mxu0 0.0
        %1326 = vmatpush1.msra.mxu0 0.0
        %1327 = vmatprep.subr.mxu0 0.0
        %v1328 = vand.u32 %v1143, 4294901760
        %v1329 = vsub.f32 %v1143, %v1328
        %1330 = vmatpush1.msra.mxu0 %v1329
        %1331 = vmatprep.subr.mxu0 0.0
        %1332 = vmatpush2.msra.mxu0 0.0
        %1333 = vmatprep.subr.mxu0 0.0
        %1334 = vmatpush2.msra.mxu0 0.0
        %1335 = vmatprep.subr.mxu0 0.0
        %1336 = vmatpush2.msra.mxu0 0.0
        %1337 = vmatprep.subr.mxu0 0.0
        %1338 = vmatpush2.msra.mxu0 0.0
        %1339 = vmatprep.subr.mxu0 0.0
        %1340 = vmatpush2.msra.mxu0 0.0
        %1341 = vmatprep.subr.mxu0 0.0
        %1342 = vmatpush2.msra.mxu0 0.0
        %1343 = vmatprep.subr.mxu0 0.0
        %1344 = vmatpush2.msra.mxu0 0.0
        %1345 = vmatprep.subr.mxu0 0.0
        %1346 = vmatpush2.msra.mxu0 0.0
        %1347 = vmatprep.subr.mxu0 0.0
        %1348 = vmatpush2.msra.mxu0 0.0
        %1349 = vmatprep.subr.mxu0 0.0
        %1350 = vmatpush2.msra.mxu0 0.0
        %1351 = vmatprep.subr.mxu0 0.0
        %1352 = vmatpush2.msra.mxu0 0.0
        %1353 = vmatprep.subr.mxu0 0.0
        %1354 = vmatpush2.msra.mxu0 0.0
        %1355 = vmatprep.subr.mxu0 0.0
        %1356 = vmatpush2.msra.mxu0 0.0
        %1357 = vmatprep.subr.mxu0 0.0
        %1358 = vmatpush2.msra.mxu0 0.0
        %1359 = vmatprep.subr.mxu0 0.0
        %1360 = vmatpush2.msra.mxu0 0.0
        %1361 = vmatprep.subr.mxu0 0.0
        %1362 = vmatpush2.msra.mxu0 0.0
        %1363 = vmatprep.mubr.f32.mxu0 0.0
        %v1364 = vand.u32 %v1140, 4294901760
        %v1365 = vsub.f32 %v1140, %v1364
        %1366 = vmatmul.mubr.f32.gmra.mxu0 %v1365
        %v1367 = vpop.f32.mrf.mxu0
        %v1368 = vadd.f32 %v1294, %v1367
        %v1369 = vpop.f32.mrf.mxu0
        %1370 = vdwg.mxu0
        %1371 = vmatprep.subr.mxu0 0.0
        %1372 = vmatpush1.msra.mxu0 0.0
        %1373 = vmatprep.subr.mxu0 0.0
        %1374 = vmatpush1.msra.mxu0 0.0
        %1375 = vmatprep.subr.mxu0 0.0
        %1376 = vmatpush1.msra.mxu0 0.0
        %1377 = vmatprep.subr.mxu0 0.0
        %1378 = vmatpush1.msra.mxu0 0.0
        %1379 = vmatprep.subr.mxu0 0.0
        %1380 = vmatpush1.msra.mxu0 0.0
        %1381 = vmatprep.subr.mxu0 0.0
        %1382 = vmatpush1.msra.mxu0 0.0
        %1383 = vmatprep.subr.mxu0 0.0
        %1384 = vmatpush1.msra.mxu0 0.0
        %1385 = vmatprep.subr.mxu0 0.0
        %1386 = vmatpush1.msra.mxu0 0.0
        %1387 = vmatprep.subr.mxu0 0.0
        %1388 = vmatpush1.msra.mxu0 0.0
        %1389 = vmatprep.subr.mxu0 0.0
        %1390 = vmatpush1.msra.mxu0 0.0
        %1391 = vmatprep.subr.mxu0 0.0
        %1392 = vmatpush1.msra.mxu0 0.0
        %1393 = vmatprep.subr.mxu0 0.0
        %1394 = vmatpush1.msra.mxu0 0.0
        %1395 = vmatprep.subr.mxu0 0.0
        %1396 = vmatpush1.msra.mxu0 0.0
        %1397 = vmatprep.subr.mxu0 0.0
        %1398 = vmatpush1.msra.mxu0 0.0
        %1399 = vmatprep.subr.mxu0 0.0
        %1400 = vmatpush1.msra.mxu0 0.0
        %1401 = vmatprep.subr.mxu0 0.0
        %v1402 = vand.u32 %v1143, 4294901760
        %1403 = vmatpush1.msra.mxu0 %v1402
        %1404 = vmatprep.subr.mxu0 0.0
        %1405 = vmatpush2.msra.mxu0 0.0
        %1406 = vmatprep.subr.mxu0 0.0
        %1407 = vmatpush2.msra.mxu0 0.0
        %1408 = vmatprep.subr.mxu0 0.0
        %1409 = vmatpush2.msra.mxu0 0.0
        %1410 = vmatprep.subr.mxu0 0.0
        %1411 = vmatpush2.msra.mxu0 0.0
        %1412 = vmatprep.subr.mxu0 0.0
        %1413 = vmatpush2.msra.mxu0 0.0
        %1414 = vmatprep.subr.mxu0 0.0
        %1415 = vmatpush2.msra.mxu0 0.0
        %1416 = vmatprep.subr.mxu0 0.0
        %1417 = vmatpush2.msra.mxu0 0.0
        %1418 = vmatprep.subr.mxu0 0.0
        %1419 = vmatpush2.msra.mxu0 0.0
        %1420 = vmatprep.subr.mxu0 0.0
        %1421 = vmatpush2.msra.mxu0 0.0
        %1422 = vmatprep.subr.mxu0 0.0
        %1423 = vmatpush2.msra.mxu0 0.0
        %1424 = vmatprep.subr.mxu0 0.0
        %1425 = vmatpush2.msra.mxu0 0.0
        %1426 = vmatprep.subr.mxu0 0.0
        %1427 = vmatpush2.msra.mxu0 0.0
        %1428 = vmatprep.subr.mxu0 0.0
        %1429 = vmatpush2.msra.mxu0 0.0
        %1430 = vmatprep.subr.mxu0 0.0
        %1431 = vmatpush2.msra.mxu0 0.0
        %1432 = vmatprep.subr.mxu0 0.0
        %1433 = vmatpush2.msra.mxu0 0.0
        %1434 = vmatprep.subr.mxu0 0.0
        %1435 = vmatpush2.msra.mxu0 0.0
        %1436 = vmatprep.mubr.f32.mxu0 0.0
        %v1437 = vand.u32 %v1140, 4294901760
        %v1438 = vsub.f32 %v1140, %v1437
        %v1439 = vand.u32 %v1438, 4294901760
        %1440 = vmatmul.mubr.f32.gmra.mxu0 %v1439
        %v1441 = vpop.f32.mrf.mxu0
        %v1442 = vadd.f32 %v1368, %v1441
        %v1443 = vpop.f32.mrf.mxu0
        %1444 = vdwg.mxu0
        %1445 = vmatprep.subr.mxu0 0.0
        %1446 = vmatpush1.msra.mxu0 0.0
        %1447 = vmatprep.subr.mxu0 0.0
        %1448 = vmatpush1.msra.mxu0 0.0
        %1449 = vmatprep.subr.mxu0 0.0
        %1450 = vmatpush1.msra.mxu0 0.0
        %1451 = vmatprep.subr.mxu0 0.0
        %1452 = vmatpush1.msra.mxu0 0.0
        %1453 = vmatprep.subr.mxu0 0.0
        %1454 = vmatpush1.msra.mxu0 0.0
        %1455 = vmatprep.subr.mxu0 0.0
        %1456 = vmatpush1.msra.mxu0 0.0
        %1457 = vmatprep.subr.mxu0 0.0
        %1458 = vmatpush1.msra.mxu0 0.0
        %1459 = vmatprep.subr.mxu0 0.0
        %1460 = vmatpush1.msra.mxu0 0.0
        %1461 = vmatprep.subr.mxu0 0.0
        %1462 = vmatpush1.msra.mxu0 0.0
        %1463 = vmatprep.subr.mxu0 0.0
        %1464 = vmatpush1.msra.mxu0 0.0
        %1465 = vmatprep.subr.mxu0 0.0
        %1466 = vmatpush1.msra.mxu0 0.0
        %1467 = vmatprep.subr.mxu0 0.0
        %1468 = vmatpush1.msra.mxu0 0.0
        %1469 = vmatprep.subr.mxu0 0.0
        %1470 = vmatpush1.msra.mxu0 0.0
        %1471 = vmatprep.subr.mxu0 0.0
        %1472 = vmatpush1.msra.mxu0 0.0
        %1473 = vmatprep.subr.mxu0 0.0
        %1474 = vmatpush1.msra.mxu0 0.0
        %1475 = vmatprep.subr.mxu0 0.0
        %v1476 = vand.u32 %v1143, 4294901760
        %v1477 = vsub.f32 %v1143, %v1476
        %v1478 = vand.u32 %v1477, 4294901760
        %1479 = vmatpush1.msra.mxu0 %v1478
        %1480 = vmatprep.subr.mxu0 0.0
        %1481 = vmatpush2.msra.mxu0 0.0
        %1482 = vmatprep.subr.mxu0 0.0
        %1483 = vmatpush2.msra.mxu0 0.0
        %1484 = vmatprep.subr.mxu0 0.0
        %1485 = vmatpush2.msra.mxu0 0.0
        %1486 = vmatprep.subr.mxu0 0.0
        %1487 = vmatpush2.msra.mxu0 0.0
        %1488 = vmatprep.subr.mxu0 0.0
        %1489 = vmatpush2.msra.mxu0 0.0
        %1490 = vmatprep.subr.mxu0 0.0
        %1491 = vmatpush2.msra.mxu0 0.0
        %1492 = vmatprep.subr.mxu0 0.0
        %1493 = vmatpush2.msra.mxu0 0.0
        %1494 = vmatprep.subr.mxu0 0.0
        %1495 = vmatpush2.msra.mxu0 0.0
        %1496 = vmatprep.subr.mxu0 0.0
        %1497 = vmatpush2.msra.mxu0 0.0
        %1498 = vmatprep.subr.mxu0 0.0
        %1499 = vmatpush2.msra.mxu0 0.0
        %1500 = vmatprep.subr.mxu0 0.0
        %1501 = vmatpush2.msra.mxu0 0.0
        %1502 = vmatprep.subr.mxu0 0.0
        %1503 = vmatpush2.msra.mxu0 0.0
        %1504 = vmatprep.subr.mxu0 0.0
        %1505 = vmatpush2.msra.mxu0 0.0
        %1506 = vmatprep.subr.mxu0 0.0
        %1507 = vmatpush2.msra.mxu0 0.0
        %1508 = vmatprep.subr.mxu0 0.0
        %1509 = vmatpush2.msra.mxu0 0.0
        %1510 = vmatprep.subr.mxu0 0.0
        %1511 = vmatpush2.msra.mxu0 0.0
        %1512 = vmatprep.mubr.f32.mxu0 0.0
        %v1513 = vand.u32 %v1140, 4294901760
        %1514 = vmatmul.mubr.f32.gmra.mxu0 %v1513
        %v1515 = vpop.f32.mrf.mxu0
        %v1516 = vadd.f32 %v1442, %v1515
        %v1517 = vpop.f32.mrf.mxu0
        %1518 = vdwg.mxu0
        %1519 = vmatprep.subr.mxu0 0.0
        %1520 = vmatpush1.msra.mxu0 0.0
        %1521 = vmatprep.subr.mxu0 0.0
        %1522 = vmatpush1.msra.mxu0 0.0
        %1523 = vmatprep.subr.mxu0 0.0
        %1524 = vmatpush1.msra.mxu0 0.0
        %1525 = vmatprep.subr.mxu0 0.0
        %1526 = vmatpush1.msra.mxu0 0.0
        %1527 = vmatprep.subr.mxu0 0.0
        %1528 = vmatpush1.msra.mxu0 0.0
        %1529 = vmatprep.subr.mxu0 0.0
        %1530 = vmatpush1.msra.mxu0 0.0
        %1531 = vmatprep.subr.mxu0 0.0
        %1532 = vmatpush1.msra.mxu0 0.0
        %1533 = vmatprep.subr.mxu0 0.0
        %1534 = vmatpush1.msra.mxu0 0.0
        %1535 = vmatprep.subr.mxu0 0.0
        %1536 = vmatpush1.msra.mxu0 0.0
        %1537 = vmatprep.subr.mxu0 0.0
        %1538 = vmatpush1.msra.mxu0 0.0
        %1539 = vmatprep.subr.mxu0 0.0
        %1540 = vmatpush1.msra.mxu0 0.0
        %1541 = vmatprep.subr.mxu0 0.0
        %1542 = vmatpush1.msra.mxu0 0.0
        %1543 = vmatprep.subr.mxu0 0.0
        %1544 = vmatpush1.msra.mxu0 0.0
        %1545 = vmatprep.subr.mxu0 0.0
        %1546 = vmatpush1.msra.mxu0 0.0
        %1547 = vmatprep.subr.mxu0 0.0
        %1548 = vmatpush1.msra.mxu0 0.0
        %1549 = vmatprep.subr.mxu0 0.0
        %v1550 = vand.u32 %v1143, 4294901760
        %1551 = vmatpush1.msra.mxu0 %v1550
        %1552 = vmatprep.subr.mxu0 0.0
        %1553 = vmatpush2.msra.mxu0 0.0
        %1554 = vmatprep.subr.mxu0 0.0
        %1555 = vmatpush2.msra.mxu0 0.0
        %1556 = vmatprep.subr.mxu0 0.0
        %1557 = vmatpush2.msra.mxu0 0.0
        %1558 = vmatprep.subr.mxu0 0.0
        %1559 = vmatpush2.msra.mxu0 0.0
        %1560 = vmatprep.subr.mxu0 0.0
        %1561 = vmatpush2.msra.mxu0 0.0
        %1562 = vmatprep.subr.mxu0 0.0
        %1563 = vmatpush2.msra.mxu0 0.0
        %1564 = vmatprep.subr.mxu0 0.0
        %1565 = vmatpush2.msra.mxu0 0.0
        %1566 = vmatprep.subr.mxu0 0.0
        %1567 = vmatpush2.msra.mxu0 0.0
        %1568 = vmatprep.subr.mxu0 0.0
        %1569 = vmatpush2.msra.mxu0 0.0
        %1570 = vmatprep.subr.mxu0 0.0
        %1571 = vmatpush2.msra.mxu0 0.0
        %1572 = vmatprep.subr.mxu0 0.0
        %1573 = vmatpush2.msra.mxu0 0.0
        %1574 = vmatprep.subr.mxu0 0.0
        %1575 = vmatpush2.msra.mxu0 0.0
        %1576 = vmatprep.subr.mxu0 0.0
        %1577 = vmatpush2.msra.mxu0 0.0
        %1578 = vmatprep.subr.mxu0 0.0
        %1579 = vmatpush2.msra.mxu0 0.0
        %1580 = vmatprep.subr.mxu0 0.0
        %1581 = vmatpush2.msra.mxu0 0.0
        %1582 = vmatprep.subr.mxu0 0.0
        %1583 = vmatpush2.msra.mxu0 0.0
        %1584 = vmatprep.mubr.f32.mxu0 0.0
        %v1585 = vand.u32 %v1140, 4294901760
        %1586 = vmatmul.mubr.f32.gmra.mxu0 %v1585
        %v1587 = vpop.f32.mrf.mxu0
        %v1588 = vadd.f32 %v1516, %v1587
        %v1589 = vpop.f32.mrf.mxu0
        %1590 = vdwg.mxu0
        %1591 = vst [vmem:[%s172] sm:$0x1] %v1588
        %s1592 = sand.u32 %s75, 1
        %s1593 = scalar_lea.sflag [#allocation4], %s1592
        %s1594 = sand.u32 %s75, 1
        %s1595 = scalar_lea.vmem [#allocation7], %s1594
        // Predicated region
        $region37: #{tpu_custom_call.1} parent=27 // pred_check
          %p1596 = pneg %p85
        $region38: #{tpu_custom_call.1} parent=27 // pred_check_branch
          %1598 = sbr.rel (%p1596) target = $region40
        $region39: #{tpu_custom_call.1} parent=27 // pred_region
          %s1600 = ssub.s32 16, 16
          %1601 = vsyncadd %s1593, %s1600
          %s1602 = smul.addr %s20, 16
          %s1603 = scalar_lea.hbm %s2, %s1602
          %s1605 = sshll.u32 %s1595, 4
          %s1606 = int_to_ptr.vmem [resolvable:$true] %s1605
          %1608 = dma.vmem_to_hbm [thread:$0]  %s1606, 16, %s1603, %s1593
        $region40: #{tpu_custom_call.1} parent=27 // pred_fallthru
          _
      $region28: #{tpu_custom_call.1} parent=5 // pred_fallthru
        _
      %p1609 = scmp.le.s32.totalorder 2, %s15
      // Predicated region
      $region41: #{tpu_custom_call.1} parent=5 // pred_check
        %p1610 = pneg %p1609
      $region42: #{tpu_custom_call.1} parent=5 // pred_check_branch
        %1612 = sbr.rel (%p1610) target = $region44
      $region43: #{tpu_custom_call.1} parent=5 // pred_region
        %s1613 = ssub.s32 %s15, 2
        // Predicated region
        $region45: #{tpu_custom_call.1} parent=43 // pred_check
          %p1614 = pneg %p91
        $region46: #{tpu_custom_call.1} parent=43 // pred_check_branch
          %1616 = sbr.rel (%p1614) target = $region48
        $region47: #{tpu_custom_call.1} parent=43 // pred_region
          %s1617 = sand.u32 %s76, 1
          %s1618 = scalar_lea.sflag [#allocation4], %s1617
          %s1619 = sand.u32 %s76, 1
          %s1620 = scalar_lea.vmem [#allocation7], %s1619
          %1621 = dma.done %s1618, 16
        $region48: #{tpu_custom_call.1} parent=43 // pred_fallthru
          _
      $region44: #{tpu_custom_call.1} parent=5 // pred_fallthru
        _
    $region6: #{tpu_custom_call.1} parent=1 // loop_footer
      %s19 = sadd.s32 1, %s15
    $region7: #{tpu_custom_call.1} parent=1 // loop_footer_branch
      %14 = sbr.rel target = $region3
    $region8: #{tpu_custom_call.1} parent=1 // loop_exit
      _
    %1622 = vsyncpa [#allocation3], 1
    %s1623 = scalar_lea.sflag [#allocation3], 1
    %1624 = vsyncpa %s1623, 1
    %1625 = vsyncpa [#allocation6], 1
    %1626 = vsyncpa [#allocation4], 1
    %s1627 = scalar_lea.sflag [#allocation4], 1
    %1628 = vsyncpa %s1627, 1

</llo_original>
